<compile_context>
chip_gen: v6e
topology: v6e:2x2x1
jax: 0.10.0
libtpu: 0.0.40
codegen_flags: <defaults>
</compile_context>

<pallas_src>
import functools
import numpy as np
import jax
import jax.numpy as jnp
from jax.experimental import pallas as pl
from jax.experimental.pallas import tpu as pltpu

BN_EPS = 1e-3  # torchvision BasicConv2d uses BatchNorm2d(eps=0.001)


def _round_up(x, m):
    return ((x + m - 1) // m) * m


def _vmem_limit_bytes():
    """Per-generation VMEM budget: ~3/4 of physical (capped), fallback 48 MiB."""
    cap = None
    try:
        cap = getattr(pltpu.get_tpu_info(), "vmem_capacity_bytes", None)
    except Exception:
        cap = None
    if not cap:
        cap = 64 * 1024 * 1024  # conservative (v7x physical per-TC)
    return int(min(cap * 3 // 4, 100 * 1024 * 1024))


VMEM_LIMIT = _vmem_limit_bytes()
GEMM_TILE_BUDGET = max(VMEM_LIMIT - (8 << 20), 24 << 20)


def _gemm_bytes(tm, tn, kp):
    """Worst-case VMEM footprint of one GEMM step: double-buffered A/out tiles,
    (conservatively double-buffered) resident weight + bias, f32 accumulator."""
    a = 2 * tm * kp * 2
    o = 2 * tm * tn * 2
    w = 2 * kp * tn * 2
    b = 2 * tn * 4
    acc = tm * tn * 4
    return a + o + w + b + acc


def _pick_m_tile(M, kp, tn):
    """Pick (TM, Mp).  Prefer the largest candidate that fits the VMEM budget with
    modest zero-padding; prefer >=2 grid blocks so both v7x TensorCores get work."""
    full = _round_up(M, 16)
    best = None
    for t in (1024, 512, 256, 128, 64):
        if _gemm_bytes(t, tn, kp) > GEMM_TILE_BUDGET:
            continue
        mp = _round_up(M, t)
        if mp - full > max(full // 8, t // 4):
            continue
        if best is None:
            best = (t, mp)
        if mp // t >= 2:
            return t, mp
    if best is not None:
        return best
    return 64, _round_up(M, 64)


def _pick_channel_tile(cp):
    """Lane (last-dim) tile for the global-average-pool kernel; cp % 128 == 0."""
    if cp <= 512:
        return cp
    for t in (512, 256, 128):
        if cp % t == 0:
            return t
    return 128


# ----------------------------------------------------------------------------
# Pallas kernels (hot path)
# ----------------------------------------------------------------------------

def _mm_bias_relu_kernel(a_ref, b_ref, bias_ref, o_ref):
    """(TM,K) x (K,TN) MXU GEMM, f32 accumulation, fused bias + ReLU epilogue."""
    acc = jnp.dot(a_ref[...], b_ref[...], preferred_element_type=jnp.float32)
    o_ref[...] = jnp.maximum(acc + bias_ref[...], 0.0).astype(o_ref.dtype)


def matmul_bias_relu(a, w, bias):
    """relu(a @ w[:K] + bias).

    a:    (M, K)  activations (cast to bf16 here).
    w:    (Kp, N) folded bf16 weights, K pre-padded to a multiple of 128.
    bias: (N,)    f32 folded BatchNorm bias.
    Returns (M, N) bf16.  Called only from inside jitted wrappers, so the
    pad/slice glue fuses with the surrounding im2col / reshape.
    """
    M, K = a.shape
    Kp, N = w.shape
    a = a.astype(jnp.bfloat16)

    Nfull = _round_up(N, 128)
    if _gemm_bytes(64, Nfull, Kp) <= GEMM_TILE_BUDGET:
        # Resident-weight path: weight/bias are one full-extent block whose index
        # map is constant over the 1-D M grid -> DMA'd into VMEM exactly once.
        TN, Np = Nfull, Nfull
        grid_n = 1
    else:
        # Safety-net fallback (never hit in this network): tile N, wide tiles.
        TN = 512
        while TN > 128 and _gemm_bytes(128, TN, Kp) > GEMM_TILE_BUDGET:
            TN //= 2
        Np = _round_up(N, TN)
        grid_n = Np // TN

    TM, Mp = _pick_m_tile(M, Kp, TN)

    if (Mp, Kp) != (M, K):
        a = jnp.pad(a, ((0, Mp - M), (0, Kp - K)))
    wp = w if Np == N else jnp.pad(w, ((0, 0), (0, Np - N)))
    bp = jnp.pad(bias.astype(jnp.float32), (0, Np - N)).reshape(1, Np)

    if grid_n == 1:
        grid = (Mp // TM,)
        in_specs = [
            pl.BlockSpec((TM, Kp), lambda i: (i, 0)),
            pl.BlockSpec((Kp, Np), lambda i: (0, 0)),   # VMEM-resident weight
            pl.BlockSpec((1, Np), lambda i: (0, 0)),    # VMEM-resident bias
        ]
        out_spec = pl.BlockSpec((TM, Np), lambda i: (i, 0))
        dims = ("parallel",)
    else:
        grid = (Mp // TM, grid_n)
        in_specs = [
            pl.BlockSpec((TM, Kp), lambda i, j: (i, 0)),
            pl.BlockSpec((Kp, TN), lambda i, j: (0, j)),
            pl.BlockSpec((1, TN), lambda i, j: (0, j)),
        ]
        out_spec = pl.BlockSpec((TM, TN), lambda i, j: (i, j))
        dims = ("parallel", "parallel")

    out = pl.pallas_call(
        _mm_bias_relu_kernel,
        out_shape=jax.ShapeDtypeStruct((Mp, Np), jnp.bfloat16),
        grid=grid,
        in_specs=in_specs,
        out_specs=out_spec,
        compiler_params=pltpu.CompilerParams(
            dimension_semantics=dims, vmem_limit_bytes=VMEM_LIMIT),
    )(a, wp, bp)
    if (Mp, Np) != (M, N):
        out = out[:M, :N]
    return out


@jax.jit
def global_avg_pool(x):
    """AdaptiveAvgPool2d((1,1)) + flatten: (N,H,W,C) -> (N,C) f32."""
    N, H, W, C = x.shape
    HW = H * W
    Cp = _round_up(C, 128)
    TC = _pick_channel_tile(Cp)
    xr = x.reshape(N, HW, C)
    if Cp != C:
        xr = jnp.pad(xr, ((0, 0), (0, 0), (0, Cp - C)))
    inv = 1.0 / HW

    def kernel(x_ref, o_ref):
        o_ref[...] = jnp.sum(x_ref[...].astype(jnp.float32), axis=1) * inv

    out = pl.pallas_call(
        kernel,
        out_shape=jax.ShapeDtypeStruct((N, Cp), jnp.float32),
        grid=(Cp // TC,),
        in_specs=[pl.BlockSpec((N, HW, TC), lambda j: (0, 0, j))],
        out_specs=pl.BlockSpec((N, TC), lambda j: (0, j)),
        compiler_params=pltpu.CompilerParams(
            dimension_semantics=("parallel",), vmem_limit_bytes=VMEM_LIMIT),
    )(xr)
    return out[:, :C] if Cp != C else out


# ----------------------------------------------------------------------------
# Parameter construction (deterministic, synthetic) + conv/pool glue
# ----------------------------------------------------------------------------

_ROOT_KEY = jax.random.PRNGKey(0)
_key_counter = [0]


def _next_key():
    _key_counter[0] += 1
    return jax.random.fold_in(_ROOT_KEY, _key_counter[0])


def _pair(v):
    return (v, v) if isinstance(v, int) else tuple(v)


def basic_conv(in_ch, out_ch, kernel_size, stride=1, padding=0):
    """BasicConv2d: Conv2d(bias=False) + BatchNorm2d(eval, eps=1e-3) + ReLU.
    BatchNorm is folded into the GEMM weight/bias; the folded weight is stored
    bf16 with K pre-padded to a multiple of 128 (zero rows) at build time."""
    kh, kw = _pair(kernel_size)
    sh, sw = _pair(stride)
    ph, pw = _pair(padding)
    K = kh * kw * in_ch
    w = jax.random.normal(_next_key(), (kh, kw, in_ch, out_ch),
                          jnp.float32) * np.float32(np.sqrt(2.0 / K))
    gamma = jnp.ones((out_ch,), jnp.float32)
    beta = jnp.zeros((out_ch,), jnp.float32)
    running_mean = jnp.zeros((out_ch,), jnp.float32)
    running_var = jnp.ones((out_ch,), jnp.float32)
    scale = gamma / jnp.sqrt(running_var + BN_EPS)
    w_folded = (w * scale).reshape(K, out_ch)
    Kp = _round_up(K, 128)
    w_folded = jnp.pad(w_folded, ((0, Kp - K), (0, 0))).astype(jnp.bfloat16)
    bias = (beta - running_mean * scale).astype(jnp.float32)
    return dict(w=w_folded, bias=bias, kh=kh, kw=kw, sh=sh, sw=sw,
                ph=ph, pw=pw, out_ch=out_ch)


def fuse_1x1(convs):
    """Fuse several 1x1/stride-1 BasicConv2d applied to the SAME input into one
    GEMM by concatenating their folded weights/biases along the N axis."""
    return dict(w=jnp.concatenate([c["w"] for c in convs], axis=1),
                bias=jnp.concatenate([c["bias"] for c in convs], axis=0),
                splits=tuple(c["out_ch"] for c in convs))


def _extract_patches(x, kh, kw, sh, sw, ph, pw):
    N, H, W, C = x.shape
    xp = jnp.pad(x, ((0, 0), (ph, ph), (pw, pw), (0, 0)))
    Ho = (H + 2 * ph - kh) // sh + 1
    Wo = (W + 2 * pw - kw) // sw + 1
    cols = []
    for i in range(kh):
        for j in range(kw):
            cols.append(xp[:, i:i + (Ho - 1) * sh + 1:sh,
                           j:j + (Wo - 1) * sw + 1:sw, :])
    patches = jnp.stack(cols, axis=3)  # (N, Ho, Wo, kh*kw, C) — K order (i,j,c)
    return patches, Ho, Wo


@functools.partial(jax.jit, static_argnames=("kh", "kw", "sh", "sw", "ph", "pw"))
def conv_gemm(x, w, bias, *, kh, kw, sh, sw, ph, pw):
    N, H, W, C = x.shape
    if (kh, kw, sh, sw, ph, pw) == (1, 1, 1, 1, 0, 0):
        Ho, Wo = H, W
        a = x.reshape(N * H * W, C)            # 1x1 conv: no im2col at all
    else:
        # TODO(synk): non-1x1 convs still materialize im2col patches; a direct
        # tap-accumulated Pallas conv was not adopted (see header note).
        patches, Ho, Wo = _extract_patches(x, kh, kw, sh, sw, ph, pw)
        a = patches.reshape(N * Ho * Wo, kh * kw * C)
    y = matmul_bias_relu(a, w, bias)
    return y.reshape(N, Ho, Wo, w.shape[1])


@functools.partial(jax.jit, static_argnames=("splits",))
def fused_1x1_gemm(x, w, bias, *, splits):
    N, H, W, C = x.shape
    y = matmul_bias_relu(x.reshape(N * H * W, C), w, bias)
    outs, off = [], 0
    for oc in splits:
        outs.append(y[:, off:off + oc].reshape(N, H, W, oc))
        off += oc
    return tuple(outs)


def apply_conv(p, x):
    return conv_gemm(x, p["w"], p["bias"], kh=p["kh"], kw=p["kw"],
                     sh=p["sh"], sw=p["sw"], ph=p["ph"], pw=p["pw"])


def apply_fused_1x1(p, x):
    return fused_1x1_gemm(x, p["w"], p["bias"], splits=p["splits"])


@functools.partial(jax.jit, static_argnames=("op", "kernel", "stride", "padding"))
def pool2d(x, *, op, kernel=3, stride=2, padding=0):
    """Max / avg pooling as a fused fold over the k*k shifted slices (single pass
    over the feature map under jit; no materialized patch tensor).
    avg uses count_include_pad=True semantics (divide by k*k, zero padding)."""
    N, H, W, C = x.shape
    k, s, p = kernel, stride, padding
    if p:
        if op == "max":
            pad_val = jnp.finfo(x.dtype).min
            xp = jnp.pad(x, ((0, 0), (p, p), (p, p), (0, 0)),
                         constant_values=pad_val)
        else:
            xp = jnp.pad(x, ((0, 0), (p, p), (p, p), (0, 0)))
    else:
        xp = x
    Ho = (H + 2 * p - k) // s + 1
    Wo = (W + 2 * p - k) // s + 1
    acc = None
    for i in range(k):
        for j in range(k):
            sl = xp[:, i:i + (Ho - 1) * s + 1:s, j:j + (Wo - 1) * s + 1:s, :]
            if op == "max":
                acc = sl if acc is None else jnp.maximum(acc, sl)
            else:
                sl = sl.astype(jnp.float32)
                acc = sl if acc is None else acc + sl
    if op == "avg":
        acc = (acc * (1.0 / (k * k))).astype(x.dtype)
    return acc


# ----------------------------------------------------------------------------
# Inception blocks (torchvision inception_v3 architecture)
# ----------------------------------------------------------------------------

def make_inception_a(in_ch, pool_features):
    return dict(
        fused_1x1=fuse_1x1([basic_conv(in_ch, 64, 1),      # branch1x1
                            basic_conv(in_ch, 48, 1),      # branch5x5_1
                            basic_conv(in_ch, 64, 1)]),    # branch3x3dbl_1
        branch5x5_2=basic_conv(48, 64, 5, padding=2),
        branch3x3dbl_2=basic_conv(64, 96, 3, padding=1),
        branch3x3dbl_3=basic_conv(96, 96, 3, padding=1),
        branch_pool=basic_conv(in_ch, pool_features, 1),
    )


def apply_inception_a(p, x):
    b1, b5_in, bd_in = apply_fused_1x1(p["fused_1x1"], x)
    b5 = apply_conv(p["branch5x5_2"], b5_in)
    bd = apply_conv(p["branch3x3dbl_3"], apply_conv(p["branch3x3dbl_2"], bd_in))
    bp = apply_conv(p["branch_pool"],
                    pool2d(x, op="avg", kernel=3, stride=1, padding=1))
    return jnp.concatenate([b1, b5, bd, bp], axis=-1)


def make_inception_b(in_ch):
    return dict(
        branch3x3=basic_conv(in_ch, 384, 3, stride=2),
        branch3x3dbl_1=basic_conv(in_ch, 64, 1),
        branch3x3dbl_2=basic_conv(64, 96, 3, padding=1),
        branch3x3dbl_3=basic_conv(96, 96, 3, stride=2),
    )


def apply_inception_b(p, x):
    b3 = apply_conv(p["branch3x3"], x)
    bd = apply_conv(p["branch3x3dbl_3"],
                    apply_conv(p["branch3x3dbl_2"],
                               apply_conv(p["branch3x3dbl_1"], x)))
    bp = pool2d(x, op="max", kernel=3, stride=2, padding=0)
    return jnp.concatenate([b3, bd, bp], axis=-1)


def make_inception_c(in_ch, c7):
    return dict(
        fused_1x1=fuse_1x1([basic_conv(in_ch, 192, 1),     # branch1x1
                            basic_conv(in_ch, c7, 1),      # branch7x7_1
                            basic_conv(in_ch, c7, 1)]),    # branch7x7dbl_1
        branch7x7_2=basic_conv(c7, c7, (1, 7), padding=(0, 3)),
        branch7x7_3=basic_conv(c7, 192, (7, 1), padding=(3, 0)),
        branch7x7dbl_2=basic_conv(c7, c7, (7, 1), padding=(3, 0)),
        branch7x7dbl_3=basic_conv(c7, c7, (1, 7), padding=(0, 3)),
        branch7x7dbl_4=basic_conv(c7, c7, (7, 1), padding=(3, 0)),
        branch7x7dbl_5=basic_conv(c7, 192, (1, 7), padding=(0, 3)),
        branch_pool=basic_conv(in_ch, 192, 1),
    )


def apply_inception_c(p, x):
    b1, b7_in, bd = apply_fused_1x1(p["fused_1x1"], x)
    b7 = apply_conv(p["branch7x7_3"], apply_conv(p["branch7x7_2"], b7_in))
    for name in ("branch7x7dbl_2", "branch7x7dbl_3",
                 "branch7x7dbl_4", "branch7x7dbl_5"):
        bd = apply_conv(p[name], bd)
    bp = apply_conv(p["branch_pool"],
                    pool2d(x, op="avg", kernel=3, stride=1, padding=1))
    return jnp.concatenate([b1, b7, bd, bp], axis=-1)


def make_inception_d(in_ch):
    return dict(
        fused_1x1=fuse_1x1([basic_conv(in_ch, 192, 1),     # branch3x3_1
                            basic_conv(in_ch, 192, 1)]),   # branch7x7x3_1
        branch3x3_2=basic_conv(192, 320, 3, stride=2),
        branch7x7x3_2=basic_conv(192, 192, (1, 7), padding=(0, 3)),
        branch7x7x3_3=basic_conv(192, 192, (7, 1), padding=(3, 0)),
        branch7x7x3_4=basic_conv(192, 192, 3, stride=2),
    )


def apply_inception_d(p, x):
    b3_in, b7 = apply_fused_1x1(p["fused_1x1"], x)
    b3 = apply_conv(p["branch3x3_2"], b3_in)
    for name in ("branch7x7x3_2", "branch7x7x3_3", "branch7x7x3_4"):
        b7 = apply_conv(p[name], b7)
    bp = pool2d(x, op="max", kernel=3, stride=2, padding=0)
    return jnp.concatenate([b3, b7, bp], axis=-1)


def make_inception_e(in_ch):
    return dict(
        fused_1x1=fuse_1x1([basic_conv(in_ch, 320, 1),     # branch1x1
                            basic_conv(in_ch, 384, 1),     # branch3x3_1
                            basic_conv(in_ch, 448, 1)]),   # branch3x3dbl_1
        branch3x3_2a=basic_conv(384, 384, (1, 3), padding=(0, 1)),
        branch3x3_2b=basic_conv(384, 384, (3, 1), padding=(1, 0)),
        branch3x3dbl_2=basic_conv(448, 384, 3, padding=1),
        branch3x3dbl_3a=basic_conv(384, 384, (1, 3), padding=(0, 1)),
        branch3x3dbl_3b=basic_conv(384, 384, (3, 1), padding=(1, 0)),
        branch_pool=basic_conv(in_ch, 192, 1),
    )


def apply_inception_e(p, x):
    b1, b3_in, bd_in = apply_fused_1x1(p["fused_1x1"], x)
    b3 = jnp.concatenate([apply_conv(p["branch3x3_2a"], b3_in),
                          apply_conv(p["branch3x3_2b"], b3_in)], axis=-1)
    bd = apply_conv(p["branch3x3dbl_2"], bd_in)
    bd = jnp.concatenate([apply_conv(p["branch3x3dbl_3a"], bd),
                          apply_conv(p["branch3x3dbl_3b"], bd)], axis=-1)
    bp = apply_conv(p["branch_pool"],
                    pool2d(x, op="avg", kernel=3, stride=1, padding=1))
    return jnp.concatenate([b1, b3, bd, bp], axis=-1)


# ----------------------------------------------------------------------------
# Full model
# ----------------------------------------------------------------------------

def build_inception_v3():
    return dict(
        Conv2d_1a_3x3=basic_conv(3, 32, 3, stride=2),
        Conv2d_2a_3x3=basic_conv(32, 32, 3),
        Conv2d_2b_3x3=basic_conv(32, 64, 3, padding=1),
        Conv2d_3b_1x1=basic_conv(64, 80, 1),
        Conv2d_4a_3x3=basic_conv(80, 192, 3),
        Mixed_5b=make_inception_a(192, 32),
        Mixed_5c=make_inception_a(256, 64),
        Mixed_5d=make_inception_a(288, 64),
        Mixed_6a=make_inception_b(288),
        Mixed_6b=make_inception_c(768, 128),
        Mixed_6c=make_inception_c(768, 160),
        Mixed_6d=make_inception_c(768, 160),
        Mixed_6e=make_inception_c(768, 192),
        Mixed_7a=make_inception_d(768),
        Mixed_7b=make_inception_e(1280),
        Mixed_7c=make_inception_e(2048),
    )


def inception_v3_forward(params, x_nchw):
    # TODO(synk): bf16 activations/weights; validate 2048-d features vs an f32
    # reference before using for FID statistics.
    x = jnp.transpose(x_nchw, (0, 2, 3, 1)).astype(jnp.bfloat16)  # NCHW->NHWC
    # block1
    x = apply_conv(params["Conv2d_1a_3x3"], x)
    x = apply_conv(params["Conv2d_2a_3x3"], x)
    x = apply_conv(params["Conv2d_2b_3x3"], x)
    x = pool2d(x, op="max", kernel=3, stride=2, padding=0)
    # block2
    x = apply_conv(params["Conv2d_3b_1x1"], x)
    x = apply_conv(params["Conv2d_4a_3x3"], x)
    x = pool2d(x, op="max", kernel=3, stride=2, padding=0)
    # block3
    x = apply_inception_a(params["Mixed_5b"], x)
    x = apply_inception_a(params["Mixed_5c"], x)
    x = apply_inception_a(params["Mixed_5d"], x)
    x = apply_inception_b(params["Mixed_6a"], x)
    x = apply_inception_c(params["Mixed_6b"], x)
    x = apply_inception_c(params["Mixed_6c"], x)
    x = apply_inception_c(params["Mixed_6d"], x)
    x = apply_inception_c(params["Mixed_6e"], x)
    # block4
    x = apply_inception_d(params["Mixed_7a"], x)
    x = apply_inception_e(params["Mixed_7b"], x)
    x = apply_inception_e(params["Mixed_7c"], x)
    x = global_avg_pool(x)  # AdaptiveAvgPool2d((1,1)) + view(N, -1) -> f32
    return x                # (N, 2048)


if __name__ == "__main__":
    params = build_inception_v3()
    # 75x75 is the smallest spatial size the InceptionV3 stride/kernel schedule
    # admits (ends at 1x1 before the adaptive average pool).
    x = jax.random.normal(jax.random.PRNGKey(0), (2, 3, 75, 75), jnp.float32)
    out = jax.block_until_ready(inception_v3_forward(params, x))
    assert out.shape == (2, 2048), out.shape
    assert out.dtype == jnp.float32
    assert bool(jnp.all(jnp.isfinite(out)))
    print("KERNEL_OK")
</pallas_src>

<mosaic_0001>
module attributes {stable_mosaic.version = 11 : i64} {
  func.func @_mm_bias_relu_kernel(%arg0: i32, %arg1: memref<1024x128xbf16, #tpu.memory_space<vmem>>, %arg2: memref<128x128xbf16, #tpu.memory_space<vmem>>, %arg3: memref<1x128xf32, #tpu.memory_space<vmem>>, %arg4: memref<1024x128xbf16, #tpu.memory_space<vmem>>) attributes {dimension_semantics = [#tpu.dimension_semantics<parallel>], iteration_bounds = array<i64: 3>, scalar_prefetch = 0 : i64, scratch_operands = 0 : i64, tpu.core_type = #tpu.core_type<tc>, window_params = [{transform_indices = @transform_0, window_bounds = array<i64: 1024, 128>}, {pipeline_mode = #tpu.pipeline_mode<synchronous>, transform_indices = @transform_1, window_bounds = array<i64: 128, 128>}, {pipeline_mode = #tpu.pipeline_mode<synchronous>, transform_indices = @transform_2, window_bounds = array<i64: 1, 128>}, {transform_indices = @transform_3, window_bounds = array<i64: 1024, 128>}]} {
    %c0 = arith.constant 0 : index
    %c0_0 = arith.constant 0 : index
    %0 = vector.load %arg1[%c0, %c0_0] : memref<1024x128xbf16, #tpu.memory_space<vmem>>, vector<1024x128xbf16>
    %c0_1 = arith.constant 0 : index
    %c0_2 = arith.constant 0 : index
    %1 = vector.load %arg2[%c0_1, %c0_2] : memref<128x128xbf16, #tpu.memory_space<vmem>>, vector<128x128xbf16>
    %cst = arith.constant dense<0.000000e+00> : vector<1024x128xf32>
    %2 = tpu.matmul %0, %1, %cst {dimension_numbers = #tpu.dot_dimension_numbers<[1], [0], [0], [1], [0, 0, 1, 1], [], []>} : vector<1024x128xbf16>, vector<128x128xbf16>, vector<1024x128xf32> -> vector<1024x128xf32>
    %c0_3 = arith.constant 0 : index
    %c0_4 = arith.constant 0 : index
    %3 = vector.load %arg3[%c0_3, %c0_4] : memref<1x128xf32, #tpu.memory_space<vmem>>, vector<1x128xf32>
    %4 = vector.broadcast %3 : vector<1x128xf32> to vector<1024x128xf32>
    %5 = arith.addf %2, %4 : vector<1024x128xf32>
    %cst_5 = arith.constant 0.000000e+00 : f32
    %6 = vector.broadcast %cst_5 : f32 to vector<1024x128xf32>
    %7 = arith.maximumf %5, %6 : vector<1024x128xf32>
    %8 = arith.truncf %7 : vector<1024x128xf32> to vector<1024x128xbf16>
    %c0_6 = arith.constant 0 : index
    %c0_7 = arith.constant 0 : index
    %9 = vector.load %arg4[%c0_6, %c0_7] : memref<1024x128xbf16, #tpu.memory_space<vmem>>, vector<1024x128xbf16>
    tpu.vector_store %arg4[%c0_6, %c0_7], %8 {strides = array<i32>} : memref<1024x128xbf16, #tpu.memory_space<vmem>>, vector<1024x128xbf16>,
    return
  }
  func.func @transform_0(%arg0: i32) -> (i32, i32) {
    %c0_i32 = arith.constant 0 : i32
    %c0_i32_0 = arith.constant 0 : i32
    return %arg0, %c0_i32 : i32, i32
  }
  func.func @transform_1(%arg0: i32) -> (i32, i32) {
    %c0_i32 = arith.constant 0 : i32
    %c0_i32_0 = arith.constant 0 : i32
    %c0_i32_1 = arith.constant 0 : i32
    return %c0_i32, %c0_i32_0 : i32, i32
  }
  func.func @transform_2(%arg0: i32) -> (i32, i32) {
    %c0_i32 = arith.constant 0 : i32
    %c0_i32_0 = arith.constant 0 : i32
    %c0_i32_1 = arith.constant 0 : i32
    return %c0_i32, %c0_i32_0 : i32, i32
  }
  func.func @transform_3(%arg0: i32) -> (i32, i32) {
    %c0_i32 = arith.constant 0 : i32
    %c0_i32_0 = arith.constant 0 : i32
    return %arg0, %c0_i32 : i32, i32
  }
}

</mosaic_0001>

<llo_original>
// kernel: conv_gemm.1
$region0: #{conv_gemm.1}
  #allocation0 [shape = 'u32[]', space=smem, size = 0x4, offset = 0x4, fixed_abs, tag = 'smem constant byte address 0x4 - core index']
  #allocation1 [shape = 'u32[144,128]{1,0:T(1,128)}', space=vmem, size = 0x12000, scoped, tag = 'internal scratch']
  %s0 = inlined_call_operand.vmem [shape: bf16[3072,128], index: 0, kind: input, shape index: {}]
  %s1 = inlined_call_operand.vmem [shape: bf16[128,128], index: 1, kind: input, shape index: {}]
  %s2 = inlined_call_operand.vmem [shape: f32[1,128], index: 2, kind: input, shape index: {}]
  %s3 = inlined_call_operand.vmem [shape: bf16[3072,128], index: 3, kind: output, shape index: {}]
  %s4 = sld [smem:[#allocation0]]
  $region45: #{conv_gemm.1} parent=0
    _
  %s6 = ssub.s32 1, %s4
  %s7 = scalar_select 0, %s6, %s4
  loop: start=0, step=1, limit=5
  $region2: #{conv_gemm.1} parent=0 // loop_pre_header
    _
  $region3: #{conv_gemm.1} parent=0 // loop_header
    %s9 = sphi 0, %s13
    %p10 = scmp.ge.s32.totalorder %s9, 5
    %s19 = sphi 0, %s21
    %s22 = sphi 0, %s19
    %s23 = sphi 0, %s22
    %s39 = sphi 0, %s23
    %s43 = sphi 0, %s43
    %s45 = sphi 0, %s43
    %s46 = sphi 0, %s45
    %s60 = sphi 0, %s46
    %s64 = sphi 0, %s64
    %s66 = sphi 0, %s64
    %s67 = sphi 0, %s66
    %s81 = sphi 0, %s67
    %s87 = sphi 0, %s89
    %s90 = sphi 0, %s87
    %s91 = sphi 0, %s90
    %s107 = sphi 0, %s91
  $region4: #{conv_gemm.1} parent=0 // loop_header_branch
    %12 = sbr.rel (%p10) target = $region8
  $region5: #{conv_gemm.1} parent=0 // loop_body
    %s14 = ssub.s32 %s9, 1
    %s15 = ssub.s32 %s9, 2
    %s16 = sadd.s32 %s9, 1
    %s17 = ssub.s32 %s9, %s16
    %p18 = scmp.eq.s32.totalorder %s17, 0
    %s20 = sadd.s32 %s19, 1
    %s21 = scalar_select %p18, %s19, %s20
    %p24 = pneg %p18
    %p25 = scmp.eq.s32.totalorder %s9, 2
    %p26 = por %p24, %p25
    %p27 = scmp.ne.s32.totalorder %s19, %s22
    %p28 = scmp.eq.s32.totalorder %s9, 0
    %p29 = por %p27, %p28
    %p30 = scmp.ne.s32.totalorder %s19, %s22
    %p31 = scmp.eq.s32.totalorder %s14, 2
    %p32 = por %p30, %p31
    %p33 = scmp.ne.s32.totalorder %s22, %s23
    %p34 = scmp.eq.s32.totalorder %s14, 0
    %p35 = por %p33, %p34
    %p36 = scmp.ne.s32.totalorder %s22, %s23
    %p37 = scmp.eq.s32.totalorder %s15, 2
    %p38 = por %p36, %p37
    %p40 = scmp.ne.s32.totalorder %s23, %s39
    %p41 = scmp.eq.s32.totalorder %s15, 0
    %p42 = por %p40, %p41
    %s44 = sadd.s32 %s43, 1
    %p47 = scmp.eq.s32.totalorder %s9, 2
    %p48 = scmp.ne.s32.totalorder %s43, %s45
    %p49 = scmp.eq.s32.totalorder %s9, 0
    %p50 = por %p48, %p49
    %p51 = scmp.ne.s32.totalorder %s43, %s45
    %p52 = scmp.eq.s32.totalorder %s14, 2
    %p53 = por %p51, %p52
    %p54 = scmp.ne.s32.totalorder %s45, %s46
    %p55 = scmp.eq.s32.totalorder %s14, 0
    %p56 = por %p54, %p55
    %p57 = scmp.ne.s32.totalorder %s45, %s46
    %p58 = scmp.eq.s32.totalorder %s15, 2
    %p59 = por %p57, %p58
    %p61 = scmp.ne.s32.totalorder %s46, %s60
    %p62 = scmp.eq.s32.totalorder %s15, 0
    %p63 = por %p61, %p62
    %s65 = sadd.s32 %s64, 1
    %p68 = scmp.eq.s32.totalorder %s9, 2
    %p69 = scmp.ne.s32.totalorder %s64, %s66
    %p70 = scmp.eq.s32.totalorder %s9, 0
    %p71 = por %p69, %p70
    %p72 = scmp.ne.s32.totalorder %s64, %s66
    %p73 = scmp.eq.s32.totalorder %s14, 2
    %p74 = por %p72, %p73
    %p75 = scmp.ne.s32.totalorder %s66, %s67
    %p76 = scmp.eq.s32.totalorder %s14, 0
    %p77 = por %p75, %p76
    %p78 = scmp.ne.s32.totalorder %s66, %s67
    %p79 = scmp.eq.s32.totalorder %s15, 2
    %p80 = por %p78, %p79
    %p82 = scmp.ne.s32.totalorder %s67, %s81
    %p83 = scmp.eq.s32.totalorder %s15, 0
    %p84 = por %p82, %p83
    %s85 = ssub.s32 %s9, %s16
    %p86 = scmp.eq.s32.totalorder %s85, 0
    %s88 = sadd.s32 %s87, 1
    %s89 = scalar_select %p86, %s87, %s88
    %p92 = pneg %p86
    %p93 = scmp.eq.s32.totalorder %s9, 2
    %p94 = por %p92, %p93
    %p95 = scmp.ne.s32.totalorder %s87, %s90
    %p96 = scmp.eq.s32.totalorder %s9, 0
    %p97 = por %p95, %p96
    %p98 = scmp.ne.s32.totalorder %s87, %s90
    %p99 = scmp.eq.s32.totalorder %s14, 2
    %p100 = por %p98, %p99
    %p101 = scmp.ne.s32.totalorder %s90, %s91
    %p102 = scmp.eq.s32.totalorder %s14, 0
    %p103 = por %p101, %p102
    %p104 = scmp.ne.s32.totalorder %s90, %s91
    %p105 = scmp.eq.s32.totalorder %s15, 2
    %p106 = por %p104, %p105
    %p108 = scmp.ne.s32.totalorder %s91, %s107
    %p109 = scmp.eq.s32.totalorder %s15, 0
    %p110 = por %p108, %p109
    %p111 = scmp.le.s32.totalorder 1, %s9
    %p112 = scmp.lt.s32.totalorder %s9, 4
    %p113 = pnand %p111, %p112
    %p114 = pneg %p113
    // Predicated region
    $region9: #{conv_gemm.1} parent=5 // pred_check
      _
    $region10: #{conv_gemm.1} parent=5 // pred_check_branch
      %116 = sbr.rel (%p113) target = $region12
    $region11: #{conv_gemm.1} parent=5 // pred_region
      %s117 = ssub.s32 %s9, 1
      // Predicated region
      $region13: #{conv_gemm.1} parent=11 // pred_check
        %p118 = pneg %p56
      $region14: #{conv_gemm.1} parent=11 // pred_check_branch
        %120 = sbr.rel (%p118) target = $region16
      $region15: #{conv_gemm.1} parent=11 // pred_region
        _
      $region16: #{conv_gemm.1} parent=11 // pred_fallthru
        _
      // Predicated region
      $region17: #{conv_gemm.1} parent=11 // pred_check
        %p121 = pneg %p77
      $region18: #{conv_gemm.1} parent=11 // pred_check_branch
        %123 = sbr.rel (%p121) target = $region20
      $region19: #{conv_gemm.1} parent=11 // pred_region
        _
      $region20: #{conv_gemm.1} parent=11 // pred_fallthru
        _
    $region12: #{conv_gemm.1} parent=5 // pred_fallthru
      _
    %p124 = scmp.lt.s32.totalorder %s9, 3
    // Predicated region
    $region21: #{conv_gemm.1} parent=5 // pred_check
      %p125 = pneg %p124
    $region22: #{conv_gemm.1} parent=5 // pred_check_branch
      %127 = sbr.rel (%p125) target = $region24
    $region23: #{conv_gemm.1} parent=5 // pred_region
      // Predicated region
      $region25: #{conv_gemm.1} parent=23 // pred_check
        %p128 = pneg %p29
      $region26: #{conv_gemm.1} parent=23 // pred_check_branch
        %130 = sbr.rel (%p128) target = $region28
      $region27: #{conv_gemm.1} parent=23 // pred_region
        %s131 = smul.u32 128, %s9
        %p132 = scmp.lt.s32.totalorder %s131, 383
        %s133 = scalar_select %p132, %s131, 383
        %s134 = smul.addr %s133, 4
        %s135 = scalar_lea.vmem %s0, %s134
        %s136 = smul.u32 128, %s9
      $region28: #{conv_gemm.1} parent=23 // pred_fallthru
        _
    $region24: #{conv_gemm.1} parent=5 // pred_fallthru
      _
    %p137 = scmp.le.s32.totalorder 1, %s9
    %p138 = scmp.lt.s32.totalorder %s9, 4
    %p139 = pnand %p137, %p138
    %p140 = pneg %p139
    // Predicated region
    $region29: #{conv_gemm.1} parent=5 // pred_check
      _
    $region30: #{conv_gemm.1} parent=5 // pred_check_branch
      %142 = sbr.rel (%p139) target = $region32
    $region31: #{conv_gemm.1} parent=5 // pred_region
      %s143 = ssub.s32 %s9, 1
      %s144 = smul.u32 128, %s14
      %p145 = scmp.lt.s32.totalorder %s144, 383
      %s146 = scalar_select %p145, %s144, 383
      %s147 = smul.addr %s146, 4
      %s148 = scalar_lea.vmem %s0, %s147
      %p149 = pneg %p35
      %p150 = pneg %p32
      %p151 = pneg %p56
      %p152 = pneg %p53
      %p153 = pneg %p77
      %p154 = pneg %p74
      %p155 = pneg %p103
      %p156 = pneg %p100
      %s157 = smul.u32 128, %s14
      %p158 = scmp.lt.s32.totalorder %s157, 383
      %s159 = scalar_select %p158, %s157, 383
      %s160 = smul.addr %s159, 4
      %s161 = scalar_lea.vmem %s3, %s160
      %s162 = smul.u32 128, %s14
      %p163 = scmp.lt.s32.totalorder %s162, 383
      %s164 = scalar_select %p163, %s162, 383
      %s165 = smul.addr %s164, 4
      %s166 = scalar_lea.vmem %s0, %s165
      %s167 = smul.u32 128, %s14
      %s168 = smul.u32 128, %s14
      %p169 = scmp.lt.s32.totalorder %s168, 383
      %s170 = scalar_select %p169, %s168, 383
      %s171 = smul.addr %s170, 4
      %s172 = scalar_lea.vmem %s3, %s171
      %s173 = smul.u32 128, %s14
      %v175 = vld [vmem:[%s166] sm:$0xf]
      %v176 = vld [vmem:[%s166 + $0x4] sm:$0xf]
      %v177 = vld [vmem:[%s166 + $0x8] sm:$0xf]
      %v178 = vld [vmem:[%s166 + $0xc] sm:$0xf]
      %v179 = vld [vmem:[%s166 + $0x10] sm:$0xf]
      %v180 = vld [vmem:[%s166 + $0x14] sm:$0xf]
      %v181 = vld [vmem:[%s166 + $0x18] sm:$0xf]
      %v182 = vld [vmem:[%s166 + $0x1c] sm:$0xf]
      %v183 = vld [vmem:[%s166 + $0x20] sm:$0xf]
      %v184 = vld [vmem:[%s166 + $0x24] sm:$0xf]
      %v185 = vld [vmem:[%s166 + $0x28] sm:$0xf]
      %v186 = vld [vmem:[%s166 + $0x2c] sm:$0xf]
      %v187 = vld [vmem:[%s166 + $0x30] sm:$0xf]
      %v188 = vld [vmem:[%s166 + $0x34] sm:$0xf]
      %v189 = vld [vmem:[%s166 + $0x38] sm:$0xf]
      %v190 = vld [vmem:[%s166 + $0x3c] sm:$0xf]
      %v191 = vld [vmem:[%s166 + $0x40] sm:$0xf]
      %v192 = vld [vmem:[%s166 + $0x44] sm:$0xf]
      %v193 = vld [vmem:[%s166 + $0x48] sm:$0xf]
      %v194 = vld [vmem:[%s166 + $0x4c] sm:$0xf]
      %v195 = vld [vmem:[%s166 + $0x50] sm:$0xf]
      %v196 = vld [vmem:[%s166 + $0x54] sm:$0xf]
      %v197 = vld [vmem:[%s166 + $0x58] sm:$0xf]
      %v198 = vld [vmem:[%s166 + $0x5c] sm:$0xf]
      %v199 = vld [vmem:[%s166 + $0x60] sm:$0xf]
      %v200 = vld [vmem:[%s166 + $0x64] sm:$0xf]
      %v201 = vld [vmem:[%s166 + $0x68] sm:$0xf]
      %v202 = vld [vmem:[%s166 + $0x6c] sm:$0xf]
      %v203 = vld [vmem:[%s166 + $0x70] sm:$0xf]
      %v204 = vld [vmem:[%s166 + $0x74] sm:$0xf]
      %v205 = vld [vmem:[%s166 + $0x78] sm:$0xf]
      %v206 = vld [vmem:[%s166 + $0x7c] sm:$0xf]
      %v207 = vld [vmem:[%s166 + $0x80] sm:$0xf]
      %v208 = vld [vmem:[%s166 + $0x84] sm:$0xf]
      %v209 = vld [vmem:[%s166 + $0x88] sm:$0xf]
      %v210 = vld [vmem:[%s166 + $0x8c] sm:$0xf]
      %v211 = vld [vmem:[%s166 + $0x90] sm:$0xf]
      %v212 = vld [vmem:[%s166 + $0x94] sm:$0xf]
      %v213 = vld [vmem:[%s166 + $0x98] sm:$0xf]
      %v214 = vld [vmem:[%s166 + $0x9c] sm:$0xf]
      %v215 = vld [vmem:[%s166 + $0xa0] sm:$0xf]
      %v216 = vld [vmem:[%s166 + $0xa4] sm:$0xf]
      %v217 = vld [vmem:[%s166 + $0xa8] sm:$0xf]
      %v218 = vld [vmem:[%s166 + $0xac] sm:$0xf]
      %v219 = vld [vmem:[%s166 + $0xb0] sm:$0xf]
      %v220 = vld [vmem:[%s166 + $0xb4] sm:$0xf]
      %v221 = vld [vmem:[%s166 + $0xb8] sm:$0xf]
      %v222 = vld [vmem:[%s166 + $0xbc] sm:$0xf]
      %v223 = vld [vmem:[%s166 + $0xc0] sm:$0xf]
      %v224 = vld [vmem:[%s166 + $0xc4] sm:$0xf]
      %v225 = vld [vmem:[%s166 + $0xc8] sm:$0xf]
      %v226 = vld [vmem:[%s166 + $0xcc] sm:$0xf]
      %v227 = vld [vmem:[%s166 + $0xd0] sm:$0xf]
      %v228 = vld [vmem:[%s166 + $0xd4] sm:$0xf]
      %v229 = vld [vmem:[%s166 + $0xd8] sm:$0xf]
      %v230 = vld [vmem:[%s166 + $0xdc] sm:$0xf]
      %v231 = vld [vmem:[%s166 + $0xe0] sm:$0xf]
      %v232 = vld [vmem:[%s166 + $0xe4] sm:$0xf]
      %v233 = vld [vmem:[%s166 + $0xe8] sm:$0xf]
      %v234 = vld [vmem:[%s166 + $0xec] sm:$0xf]
      %v235 = vld [vmem:[%s166 + $0xf0] sm:$0xf]
      %v236 = vld [vmem:[%s166 + $0xf4] sm:$0xf]
      %v237 = vld [vmem:[%s166 + $0xf8] sm:$0xf]
      %v238 = vld [vmem:[%s166 + $0xfc] sm:$0xf]
      %v239 = vld [vmem:[%s166 + $0x100] sm:$0xf]
      %v240 = vld [vmem:[%s166 + $0x104] sm:$0xf]
      %v241 = vld [vmem:[%s166 + $0x108] sm:$0xf]
      %v242 = vld [vmem:[%s166 + $0x10c] sm:$0xf]
      %v243 = vld [vmem:[%s166 + $0x110] sm:$0xf]
      %v244 = vld [vmem:[%s166 + $0x114] sm:$0xf]
      %v245 = vld [vmem:[%s166 + $0x118] sm:$0xf]
      %v246 = vld [vmem:[%s166 + $0x11c] sm:$0xf]
      %v247 = vld [vmem:[%s166 + $0x120] sm:$0xf]
      %v248 = vld [vmem:[%s166 + $0x124] sm:$0xf]
      %v249 = vld [vmem:[%s166 + $0x128] sm:$0xf]
      %v250 = vld [vmem:[%s166 + $0x12c] sm:$0xf]
      %v251 = vld [vmem:[%s166 + $0x130] sm:$0xf]
      %v252 = vld [vmem:[%s166 + $0x134] sm:$0xf]
      %v253 = vld [vmem:[%s166 + $0x138] sm:$0xf]
      %v254 = vld [vmem:[%s166 + $0x13c] sm:$0xf]
      %v255 = vld [vmem:[%s166 + $0x140] sm:$0xf]
      %v256 = vld [vmem:[%s166 + $0x144] sm:$0xf]
      %v257 = vld [vmem:[%s166 + $0x148] sm:$0xf]
      %v258 = vld [vmem:[%s166 + $0x14c] sm:$0xf]
      %v259 = vld [vmem:[%s166 + $0x150] sm:$0xf]
      %v260 = vld [vmem:[%s166 + $0x154] sm:$0xf]
      %v261 = vld [vmem:[%s166 + $0x158] sm:$0xf]
      %v262 = vld [vmem:[%s166 + $0x15c] sm:$0xf]
      %v263 = vld [vmem:[%s166 + $0x160] sm:$0xf]
      %v264 = vld [vmem:[%s166 + $0x164] sm:$0xf]
      %v265 = vld [vmem:[%s166 + $0x168] sm:$0xf]
      %v266 = vld [vmem:[%s166 + $0x16c] sm:$0xf]
      %v267 = vld [vmem:[%s166 + $0x170] sm:$0xf]
      %v268 = vld [vmem:[%s166 + $0x174] sm:$0xf]
      %v269 = vld [vmem:[%s166 + $0x178] sm:$0xf]
      %v270 = vld [vmem:[%s166 + $0x17c] sm:$0xf]
      %v271 = vld [vmem:[%s166 + $0x180] sm:$0xf]
      %v272 = vld [vmem:[%s166 + $0x184] sm:$0xf]
      %v273 = vld [vmem:[%s166 + $0x188] sm:$0xf]
      %v274 = vld [vmem:[%s166 + $0x18c] sm:$0xf]
      %v275 = vld [vmem:[%s166 + $0x190] sm:$0xf]
      %v276 = vld [vmem:[%s166 + $0x194] sm:$0xf]
      %v277 = vld [vmem:[%s166 + $0x198] sm:$0xf]
      %v278 = vld [vmem:[%s166 + $0x19c] sm:$0xf]
      %v279 = vld [vmem:[%s166 + $0x1a0] sm:$0xf]
      %v280 = vld [vmem:[%s166 + $0x1a4] sm:$0xf]
      %v281 = vld [vmem:[%s166 + $0x1a8] sm:$0xf]
      %v282 = vld [vmem:[%s166 + $0x1ac] sm:$0xf]
      %v283 = vld [vmem:[%s166 + $0x1b0] sm:$0xf]
      %v284 = vld [vmem:[%s166 + $0x1b4] sm:$0xf]
      %v285 = vld [vmem:[%s166 + $0x1b8] sm:$0xf]
      %v286 = vld [vmem:[%s166 + $0x1bc] sm:$0xf]
      %v287 = vld [vmem:[%s166 + $0x1c0] sm:$0xf]
      %v288 = vld [vmem:[%s166 + $0x1c4] sm:$0xf]
      %v289 = vld [vmem:[%s166 + $0x1c8] sm:$0xf]
      %v290 = vld [vmem:[%s166 + $0x1cc] sm:$0xf]
      %v291 = vld [vmem:[%s166 + $0x1d0] sm:$0xf]
      %v292 = vld [vmem:[%s166 + $0x1d4] sm:$0xf]
      %v293 = vld [vmem:[%s166 + $0x1d8] sm:$0xf]
      %v294 = vld [vmem:[%s166 + $0x1dc] sm:$0xf]
      %v295 = vld [vmem:[%s166 + $0x1e0] sm:$0xf]
      %v296 = vld [vmem:[%s166 + $0x1e4] sm:$0xf]
      %v297 = vld [vmem:[%s166 + $0x1e8] sm:$0xf]
      %v298 = vld [vmem:[%s166 + $0x1ec] sm:$0xf]
      %v299 = vld [vmem:[%s166 + $0x1f0] sm:$0xf]
      %v300 = vld [vmem:[%s166 + $0x1f4] sm:$0xf]
      %v301 = vld [vmem:[%s166 + $0x1f8] sm:$0xf]
      %v302 = vld [vmem:[%s166 + $0x1fc] sm:$0xf]
      %v303 = vld [vmem:[%s1] sm:$0xf]
      %v304 = vld [vmem:[%s1 + $0x4] sm:$0xf]
      %v305 = vld [vmem:[%s1 + $0x8] sm:$0xf]
      %v306 = vld [vmem:[%s1 + $0xc] sm:$0xf]
      %v307 = vld [vmem:[%s1 + $0x10] sm:$0xf]
      %v308 = vld [vmem:[%s1 + $0x14] sm:$0xf]
      %v309 = vld [vmem:[%s1 + $0x18] sm:$0xf]
      %v310 = vld [vmem:[%s1 + $0x1c] sm:$0xf]
      %v311 = vld [vmem:[%s1 + $0x20] sm:$0xf]
      %v312 = vld [vmem:[%s1 + $0x24] sm:$0xf]
      %v313 = vld [vmem:[%s1 + $0x28] sm:$0xf]
      %v314 = vld [vmem:[%s1 + $0x2c] sm:$0xf]
      %v315 = vld [vmem:[%s1 + $0x30] sm:$0xf]
      %v316 = vld [vmem:[%s1 + $0x34] sm:$0xf]
      %v317 = vld [vmem:[%s1 + $0x38] sm:$0xf]
      %v318 = vld [vmem:[%s1 + $0x3c] sm:$0xf]
      %v319 = vld [vmem:[%s2] sm:$0x1]
      %v321 = vlaneseq
      %v322 = vshrl.u32 %v321, 7
      %v323 = vsub.s32 0, %v322
      %v324 = vrot.slane %v319, %v323
      %v454 = vunpack.c.l.b16 %v175
      %v455 = vunpack.c.l.b16 %v176
      %v456 = vunpack.c.l.b16 %v177
      %v457 = vunpack.c.l.b16 %v178
      %v458 = vunpack.c.l.b16 %v179
      %v459 = vunpack.c.l.b16 %v180
      %v460 = vunpack.c.l.b16 %v181
      %v461 = vunpack.c.l.b16 %v182
      %v462 = vunpack.c.l.b16 %v183
      %v463 = vunpack.c.l.b16 %v184
      %v464 = vunpack.c.l.b16 %v185
      %v465 = vunpack.c.l.b16 %v186
      %v466 = vunpack.c.l.b16 %v187
      %v467 = vunpack.c.l.b16 %v188
      %v468 = vunpack.c.l.b16 %v189
      %v469 = vunpack.c.l.b16 %v190
      %v470 = vunpack.c.l.b16 %v191
      %v471 = vunpack.c.l.b16 %v192
      %v472 = vunpack.c.l.b16 %v193
      %v473 = vunpack.c.l.b16 %v194
      %v474 = vunpack.c.l.b16 %v195
      %v475 = vunpack.c.l.b16 %v196
      %v476 = vunpack.c.l.b16 %v197
      %v477 = vunpack.c.l.b16 %v198
      %v478 = vunpack.c.l.b16 %v199
      %v479 = vunpack.c.l.b16 %v200
      %v480 = vunpack.c.l.b16 %v201
      %v481 = vunpack.c.l.b16 %v202
      %v482 = vunpack.c.l.b16 %v203
      %v483 = vunpack.c.l.b16 %v204
      %v484 = vunpack.c.l.b16 %v205
      %v485 = vunpack.c.l.b16 %v206
      %v486 = vunpack.c.l.b16 %v207
      %v487 = vunpack.c.l.b16 %v208
      %v488 = vunpack.c.l.b16 %v209
      %v489 = vunpack.c.l.b16 %v210
      %v490 = vunpack.c.l.b16 %v211
      %v491 = vunpack.c.l.b16 %v212
      %v492 = vunpack.c.l.b16 %v213
      %v493 = vunpack.c.l.b16 %v214
      %v494 = vunpack.c.l.b16 %v215
      %v495 = vunpack.c.l.b16 %v216
      %v496 = vunpack.c.l.b16 %v217
      %v497 = vunpack.c.l.b16 %v218
      %v498 = vunpack.c.l.b16 %v219
      %v499 = vunpack.c.l.b16 %v220
      %v500 = vunpack.c.l.b16 %v221
      %v501 = vunpack.c.l.b16 %v222
      %v502 = vunpack.c.l.b16 %v223
      %v503 = vunpack.c.l.b16 %v224
      %v504 = vunpack.c.l.b16 %v225
      %v505 = vunpack.c.l.b16 %v226
      %v506 = vunpack.c.l.b16 %v227
      %v507 = vunpack.c.l.b16 %v228
      %v508 = vunpack.c.l.b16 %v229
      %v509 = vunpack.c.l.b16 %v230
      %v510 = vunpack.c.l.b16 %v231
      %v511 = vunpack.c.l.b16 %v232
      %v512 = vunpack.c.l.b16 %v233
      %v513 = vunpack.c.l.b16 %v234
      %v514 = vunpack.c.l.b16 %v235
      %v515 = vunpack.c.l.b16 %v236
      %v516 = vunpack.c.l.b16 %v237
      %v517 = vunpack.c.l.b16 %v238
      %v518 = vunpack.c.l.b16 %v239
      %v519 = vunpack.c.l.b16 %v240
      %v520 = vunpack.c.l.b16 %v241
      %v521 = vunpack.c.l.b16 %v242
      %v522 = vunpack.c.l.b16 %v243
      %v523 = vunpack.c.l.b16 %v244
      %v524 = vunpack.c.l.b16 %v245
      %v525 = vunpack.c.l.b16 %v246
      %v526 = vunpack.c.l.b16 %v247
      %v527 = vunpack.c.l.b16 %v248
      %v528 = vunpack.c.l.b16 %v249
      %v529 = vunpack.c.l.b16 %v250
      %v530 = vunpack.c.l.b16 %v251
      %v531 = vunpack.c.l.b16 %v252
      %v532 = vunpack.c.l.b16 %v253
      %v533 = vunpack.c.l.b16 %v254
      %v534 = vunpack.c.l.b16 %v255
      %v535 = vunpack.c.l.b16 %v256
      %v536 = vunpack.c.l.b16 %v257
      %v537 = vunpack.c.l.b16 %v258
      %v538 = vunpack.c.l.b16 %v259
      %v539 = vunpack.c.l.b16 %v260
      %v540 = vunpack.c.l.b16 %v261
      %v541 = vunpack.c.l.b16 %v262
      %v542 = vunpack.c.l.b16 %v263
      %v543 = vunpack.c.l.b16 %v264
      %v544 = vunpack.c.l.b16 %v265
      %v545 = vunpack.c.l.b16 %v266
      %v546 = vunpack.c.l.b16 %v267
      %v547 = vunpack.c.l.b16 %v268
      %v548 = vunpack.c.l.b16 %v269
      %v549 = vunpack.c.l.b16 %v270
      %v550 = vunpack.c.l.b16 %v271
      %v551 = vunpack.c.l.b16 %v272
      %v552 = vunpack.c.l.b16 %v273
      %v553 = vunpack.c.l.b16 %v274
      %v554 = vunpack.c.l.b16 %v275
      %v555 = vunpack.c.l.b16 %v276
      %v556 = vunpack.c.l.b16 %v277
      %v557 = vunpack.c.l.b16 %v278
      %v558 = vunpack.c.l.b16 %v279
      %v559 = vunpack.c.l.b16 %v280
      %v560 = vunpack.c.l.b16 %v281
      %v561 = vunpack.c.l.b16 %v282
      %v562 = vunpack.c.l.b16 %v283
      %v563 = vunpack.c.l.b16 %v284
      %v564 = vunpack.c.l.b16 %v285
      %v565 = vunpack.c.l.b16 %v286
      %v566 = vunpack.c.l.b16 %v287
      %v567 = vunpack.c.l.b16 %v288
      %v568 = vunpack.c.l.b16 %v289
      %v569 = vunpack.c.l.b16 %v290
      %v570 = vunpack.c.l.b16 %v291
      %v571 = vunpack.c.l.b16 %v292
      %v572 = vunpack.c.l.b16 %v293
      %v573 = vunpack.c.l.b16 %v294
      %v574 = vunpack.c.l.b16 %v295
      %v575 = vunpack.c.l.b16 %v296
      %v576 = vunpack.c.l.b16 %v297
      %v577 = vunpack.c.l.b16 %v298
      %v578 = vunpack.c.l.b16 %v299
      %v579 = vunpack.c.l.b16 %v300
      %v580 = vunpack.c.l.b16 %v301
      %v581 = vunpack.c.l.b16 %v302
      %v582 = vpack.c.b16 %v455, %v454
      %v583 = vpack.c.b16 %v457, %v456
      %v584 = vpack.c.b16 %v459, %v458
      %v585 = vpack.c.b16 %v461, %v460
      %v586 = vpack.c.b16 %v463, %v462
      %v587 = vpack.c.b16 %v465, %v464
      %v588 = vpack.c.b16 %v467, %v466
      %v589 = vpack.c.b16 %v469, %v468
      %v590 = vpack.c.b16 %v471, %v470
      %v591 = vpack.c.b16 %v473, %v472
      %v592 = vpack.c.b16 %v475, %v474
      %v593 = vpack.c.b16 %v477, %v476
      %v594 = vpack.c.b16 %v479, %v478
      %v595 = vpack.c.b16 %v481, %v480
      %v596 = vpack.c.b16 %v483, %v482
      %v597 = vpack.c.b16 %v485, %v484
      %v598 = vpack.c.b16 %v487, %v486
      %v599 = vpack.c.b16 %v489, %v488
      %v600 = vpack.c.b16 %v491, %v490
      %v601 = vpack.c.b16 %v493, %v492
      %v602 = vpack.c.b16 %v495, %v494
      %v603 = vpack.c.b16 %v497, %v496
      %v604 = vpack.c.b16 %v499, %v498
      %v605 = vpack.c.b16 %v501, %v500
      %v606 = vpack.c.b16 %v503, %v502
      %v607 = vpack.c.b16 %v505, %v504
      %v608 = vpack.c.b16 %v507, %v506
      %v609 = vpack.c.b16 %v509, %v508
      %v610 = vpack.c.b16 %v511, %v510
      %v611 = vpack.c.b16 %v513, %v512
      %v612 = vpack.c.b16 %v515, %v514
      %v613 = vpack.c.b16 %v517, %v516
      %v614 = vpack.c.b16 %v519, %v518
      %v615 = vpack.c.b16 %v521, %v520
      %v616 = vpack.c.b16 %v523, %v522
      %v617 = vpack.c.b16 %v525, %v524
      %v618 = vpack.c.b16 %v527, %v526
      %v619 = vpack.c.b16 %v529, %v528
      %v620 = vpack.c.b16 %v531, %v530
      %v621 = vpack.c.b16 %v533, %v532
      %v622 = vpack.c.b16 %v535, %v534
      %v623 = vpack.c.b16 %v537, %v536
      %v624 = vpack.c.b16 %v539, %v538
      %v625 = vpack.c.b16 %v541, %v540
      %v626 = vpack.c.b16 %v543, %v542
      %v627 = vpack.c.b16 %v545, %v544
      %v628 = vpack.c.b16 %v547, %v546
      %v629 = vpack.c.b16 %v549, %v548
      %v630 = vpack.c.b16 %v551, %v550
      %v631 = vpack.c.b16 %v553, %v552
      %v632 = vpack.c.b16 %v555, %v554
      %v633 = vpack.c.b16 %v557, %v556
      %v634 = vpack.c.b16 %v559, %v558
      %v635 = vpack.c.b16 %v561, %v560
      %v636 = vpack.c.b16 %v563, %v562
      %v637 = vpack.c.b16 %v565, %v564
      %v638 = vpack.c.b16 %v567, %v566
      %v639 = vpack.c.b16 %v569, %v568
      %v640 = vpack.c.b16 %v571, %v570
      %v641 = vpack.c.b16 %v573, %v572
      %v642 = vpack.c.b16 %v575, %v574
      %v643 = vpack.c.b16 %v577, %v576
      %v644 = vpack.c.b16 %v579, %v578
      %v645 = vpack.c.b16 %v581, %v580
      %v726 = vunpack.c.l.b16 %v303
      %v727 = vunpack.c.l.b16 %v304
      %v728 = vunpack.c.l.b16 %v305
      %v729 = vunpack.c.l.b16 %v306
      %v730 = vunpack.c.l.b16 %v307
      %v731 = vunpack.c.l.b16 %v308
      %v732 = vunpack.c.l.b16 %v309
      %v733 = vunpack.c.l.b16 %v310
      %v734 = vunpack.c.l.b16 %v311
      %v735 = vunpack.c.l.b16 %v312
      %v736 = vunpack.c.l.b16 %v313
      %v737 = vunpack.c.l.b16 %v314
      %v738 = vunpack.c.l.b16 %v315
      %v739 = vunpack.c.l.b16 %v316
      %v740 = vunpack.c.l.b16 %v317
      %v741 = vunpack.c.l.b16 %v318
      %v742 = vpack.c.b16 %v727, %v726
      %v743 = vpack.c.b16 %v729, %v728
      %v744 = vpack.c.b16 %v731, %v730
      %v745 = vpack.c.b16 %v733, %v732
      %v746 = vpack.c.b16 %v735, %v734
      %v747 = vpack.c.b16 %v737, %v736
      %v748 = vpack.c.b16 %v739, %v738
      %v749 = vpack.c.b16 %v741, %v740
      %758 = vmatprep.subr.bf16.mxu0 0
      %759 = vmatpush1.bf16.msra.mxu0 %v749
      %760 = vmatprep.subr.bf16.mxu0 0
      %761 = vmatpush1.bf16.msra.mxu0 %v748
      %762 = vmatprep.subr.bf16.mxu0 0
      %763 = vmatpush1.bf16.msra.mxu0 %v747
      %764 = vmatprep.subr.bf16.mxu0 0
      %765 = vmatpush1.bf16.msra.mxu0 %v746
      %766 = vmatprep.subr.bf16.mxu0 0
      %767 = vmatpush1.bf16.msra.mxu0 %v745
      %768 = vmatprep.subr.bf16.mxu0 0
      %769 = vmatpush1.bf16.msra.mxu0 %v744
      %770 = vmatprep.subr.bf16.mxu0 0
      %771 = vmatpush1.bf16.msra.mxu0 %v743
      %772 = vmatprep.subr.bf16.mxu0 0
      %773 = vmatpush1.bf16.msra.mxu0 %v742
      %774 = vmatprep.subr.bf16.mxu0 0
      %775 = vmatpush2.bf16.msra.mxu0 0
      %776 = vmatprep.subr.bf16.mxu0 0
      %777 = vmatpush2.bf16.msra.mxu0 0
      %778 = vmatprep.subr.bf16.mxu0 0
      %779 = vmatpush2.bf16.msra.mxu0 0
      %780 = vmatprep.subr.bf16.mxu0 0
      %781 = vmatpush2.bf16.msra.mxu0 0
      %782 = vmatprep.subr.bf16.mxu0 0
      %783 = vmatpush2.bf16.msra.mxu0 0
      %784 = vmatprep.subr.bf16.mxu0 0
      %785 = vmatpush2.bf16.msra.mxu0 0
      %786 = vmatprep.subr.bf16.mxu0 0
      %787 = vmatpush2.bf16.msra.mxu0 0
      %788 = vmatprep.subr.bf16.mxu0 0
      %789 = vmatpush2.bf16.msra.mxu0 0
      %790 = vmatprep.mubr.bf16.mxu0 0
      %791 = vmatmul.mubr.bf16.gmra.mxu0 %v582
      %v792 = vpop.f32.mrf.mxu0
      %v793 = vadd.f32 %v324, %v792
      %v794 = vpop.f32.mrf.mxu0
      %v795 = vpop.f32.mrf.mxu0
      %v796 = vadd.f32 %v324, %v795
      %v797 = vpop.f32.mrf.mxu0
      %798 = vmatprep.mubr.bf16.mxu0 0
      %799 = vmatmul.mubr.bf16.gmra.mxu0 %v583
      %v800 = vpop.f32.mrf.mxu0
      %v801 = vadd.f32 %v324, %v800
      %v802 = vpop.f32.mrf.mxu0
      %v803 = vpop.f32.mrf.mxu0
      %v804 = vadd.f32 %v324, %v803
      %v805 = vpop.f32.mrf.mxu0
      %806 = vmatprep.mubr.bf16.mxu0 0
      %807 = vmatmul.mubr.bf16.gmra.mxu0 %v584
      %v808 = vpop.f32.mrf.mxu0
      %v809 = vadd.f32 %v324, %v808
      %v810 = vpop.f32.mrf.mxu0
      %v811 = vpop.f32.mrf.mxu0
      %v812 = vadd.f32 %v324, %v811
      %v813 = vpop.f32.mrf.mxu0
      %814 = vmatprep.mubr.bf16.mxu0 0
      %815 = vmatmul.mubr.bf16.gmra.mxu0 %v585
      %v816 = vpop.f32.mrf.mxu0
      %v817 = vadd.f32 %v324, %v816
      %v818 = vpop.f32.mrf.mxu0
      %v819 = vpop.f32.mrf.mxu0
      %v820 = vadd.f32 %v324, %v819
      %v821 = vpop.f32.mrf.mxu0
      %822 = vmatprep.mubr.bf16.mxu0 0
      %823 = vmatmul.mubr.bf16.gmra.mxu0 %v586
      %v824 = vpop.f32.mrf.mxu0
      %v825 = vadd.f32 %v324, %v824
      %v826 = vpop.f32.mrf.mxu0
      %v827 = vpop.f32.mrf.mxu0
      %v828 = vadd.f32 %v324, %v827
      %v829 = vpop.f32.mrf.mxu0
      %830 = vmatprep.mubr.bf16.mxu0 0
      %831 = vmatmul.mubr.bf16.gmra.mxu0 %v587
      %v832 = vpop.f32.mrf.mxu0
      %v833 = vadd.f32 %v324, %v832
      %v834 = vpop.f32.mrf.mxu0
      %v835 = vpop.f32.mrf.mxu0
      %v836 = vadd.f32 %v324, %v835
      %v837 = vpop.f32.mrf.mxu0
      %838 = vmatprep.mubr.bf16.mxu0 0
      %839 = vmatmul.mubr.bf16.gmra.mxu0 %v588
      %v840 = vpop.f32.mrf.mxu0
      %v841 = vadd.f32 %v324, %v840
      %v842 = vpop.f32.mrf.mxu0
      %v843 = vpop.f32.mrf.mxu0
      %v844 = vadd.f32 %v324, %v843
      %v845 = vpop.f32.mrf.mxu0
      %846 = vmatprep.mubr.bf16.mxu0 0
      %847 = vmatmul.mubr.bf16.gmra.mxu0 %v589
      %v848 = vpop.f32.mrf.mxu0
      %v849 = vadd.f32 %v324, %v848
      %v850 = vpop.f32.mrf.mxu0
      %v851 = vpop.f32.mrf.mxu0
      %v852 = vadd.f32 %v324, %v851
      %v853 = vpop.f32.mrf.mxu0
      %854 = vmatprep.mubr.bf16.mxu0 0
      %855 = vmatmul.mubr.bf16.gmra.mxu0 %v590
      %v856 = vpop.f32.mrf.mxu0
      %v857 = vadd.f32 %v324, %v856
      %v858 = vpop.f32.mrf.mxu0
      %v859 = vpop.f32.mrf.mxu0
      %v860 = vadd.f32 %v324, %v859
      %v861 = vpop.f32.mrf.mxu0
      %862 = vmatprep.mubr.bf16.mxu0 0
      %863 = vmatmul.mubr.bf16.gmra.mxu0 %v591
      %v864 = vpop.f32.mrf.mxu0
      %v865 = vadd.f32 %v324, %v864
      %v866 = vpop.f32.mrf.mxu0
      %v867 = vpop.f32.mrf.mxu0
      %v868 = vadd.f32 %v324, %v867
      %v869 = vpop.f32.mrf.mxu0
      %870 = vmatprep.mubr.bf16.mxu0 0
      %871 = vmatmul.mubr.bf16.gmra.mxu0 %v592
      %v872 = vpop.f32.mrf.mxu0
      %v873 = vadd.f32 %v324, %v872
      %v874 = vpop.f32.mrf.mxu0
      %v875 = vpop.f32.mrf.mxu0
      %v876 = vadd.f32 %v324, %v875
      %v877 = vpop.f32.mrf.mxu0
      %878 = vmatprep.mubr.bf16.mxu0 0
      %879 = vmatmul.mubr.bf16.gmra.mxu0 %v593
      %v880 = vpop.f32.mrf.mxu0
      %v881 = vadd.f32 %v324, %v880
      %v882 = vpop.f32.mrf.mxu0
      %v883 = vpop.f32.mrf.mxu0
      %v884 = vadd.f32 %v324, %v883
      %v885 = vpop.f32.mrf.mxu0
      %886 = vmatprep.mubr.bf16.mxu0 0
      %887 = vmatmul.mubr.bf16.gmra.mxu0 %v594
      %v888 = vpop.f32.mrf.mxu0
      %v889 = vadd.f32 %v324, %v888
      %v890 = vpop.f32.mrf.mxu0
      %v891 = vpop.f32.mrf.mxu0
      %v892 = vadd.f32 %v324, %v891
      %v893 = vpop.f32.mrf.mxu0
      %894 = vmatprep.mubr.bf16.mxu0 0
      %895 = vmatmul.mubr.bf16.gmra.mxu0 %v595
      %v896 = vpop.f32.mrf.mxu0
      %v897 = vadd.f32 %v324, %v896
      %v898 = vpop.f32.mrf.mxu0
      %v899 = vpop.f32.mrf.mxu0
      %v900 = vadd.f32 %v324, %v899
      %v901 = vpop.f32.mrf.mxu0
      %902 = vmatprep.mubr.bf16.mxu0 0
      %903 = vmatmul.mubr.bf16.gmra.mxu0 %v596
      %v904 = vpop.f32.mrf.mxu0
      %v905 = vadd.f32 %v324, %v904
      %v906 = vpop.f32.mrf.mxu0
      %v907 = vpop.f32.mrf.mxu0
      %v908 = vadd.f32 %v324, %v907
      %v909 = vpop.f32.mrf.mxu0
      %910 = vmatprep.mubr.bf16.mxu0 0
      %911 = vmatmul.mubr.bf16.gmra.mxu0 %v597
      %v912 = vpop.f32.mrf.mxu0
      %v913 = vadd.f32 %v324, %v912
      %v914 = vpop.f32.mrf.mxu0
      %v915 = vpop.f32.mrf.mxu0
      %v916 = vadd.f32 %v324, %v915
      %v917 = vpop.f32.mrf.mxu0
      %918 = vmatprep.mubr.bf16.mxu0 0
      %919 = vmatmul.mubr.bf16.gmra.mxu0 %v598
      %v920 = vpop.f32.mrf.mxu0
      %v921 = vadd.f32 %v324, %v920
      %v922 = vpop.f32.mrf.mxu0
      %v923 = vpop.f32.mrf.mxu0
      %v924 = vadd.f32 %v324, %v923
      %v925 = vpop.f32.mrf.mxu0
      %926 = vmatprep.mubr.bf16.mxu0 0
      %927 = vmatmul.mubr.bf16.gmra.mxu0 %v599
      %v928 = vpop.f32.mrf.mxu0
      %v929 = vadd.f32 %v324, %v928
      %v930 = vpop.f32.mrf.mxu0
      %v931 = vpop.f32.mrf.mxu0
      %v932 = vadd.f32 %v324, %v931
      %v933 = vpop.f32.mrf.mxu0
      %934 = vmatprep.mubr.bf16.mxu0 0
      %935 = vmatmul.mubr.bf16.gmra.mxu0 %v600
      %v936 = vpop.f32.mrf.mxu0
      %v937 = vadd.f32 %v324, %v936
      %v938 = vpop.f32.mrf.mxu0
      %v939 = vpop.f32.mrf.mxu0
      %v940 = vadd.f32 %v324, %v939
      %v941 = vpop.f32.mrf.mxu0
      %942 = vmatprep.mubr.bf16.mxu0 0
      %943 = vmatmul.mubr.bf16.gmra.mxu0 %v601
      %v944 = vpop.f32.mrf.mxu0
      %v945 = vadd.f32 %v324, %v944
      %v946 = vpop.f32.mrf.mxu0
      %v947 = vpop.f32.mrf.mxu0
      %v948 = vadd.f32 %v324, %v947
      %v949 = vpop.f32.mrf.mxu0
      %950 = vmatprep.mubr.bf16.mxu0 0
      %951 = vmatmul.mubr.bf16.gmra.mxu0 %v602
      %v952 = vpop.f32.mrf.mxu0
      %v953 = vadd.f32 %v324, %v952
      %v954 = vpop.f32.mrf.mxu0
      %v955 = vpop.f32.mrf.mxu0
      %v956 = vadd.f32 %v324, %v955
      %v957 = vpop.f32.mrf.mxu0
      %958 = vmatprep.mubr.bf16.mxu0 0
      %959 = vmatmul.mubr.bf16.gmra.mxu0 %v603
      %v960 = vpop.f32.mrf.mxu0
      %v961 = vadd.f32 %v324, %v960
      %v962 = vpop.f32.mrf.mxu0
      %v963 = vpop.f32.mrf.mxu0
      %v964 = vadd.f32 %v324, %v963
      %v965 = vpop.f32.mrf.mxu0
      %966 = vmatprep.mubr.bf16.mxu0 0
      %967 = vmatmul.mubr.bf16.gmra.mxu0 %v604
      %v968 = vpop.f32.mrf.mxu0
      %v969 = vadd.f32 %v324, %v968
      %v970 = vpop.f32.mrf.mxu0
      %v971 = vpop.f32.mrf.mxu0
      %v972 = vadd.f32 %v324, %v971
      %v973 = vpop.f32.mrf.mxu0
      %974 = vmatprep.mubr.bf16.mxu0 0
      %975 = vmatmul.mubr.bf16.gmra.mxu0 %v605
      %v976 = vpop.f32.mrf.mxu0
      %v977 = vadd.f32 %v324, %v976
      %v978 = vpop.f32.mrf.mxu0
      %v979 = vpop.f32.mrf.mxu0
      %v980 = vadd.f32 %v324, %v979
      %v981 = vpop.f32.mrf.mxu0
      %982 = vmatprep.mubr.bf16.mxu0 0
      %983 = vmatmul.mubr.bf16.gmra.mxu0 %v606
      %v984 = vpop.f32.mrf.mxu0
      %v985 = vadd.f32 %v324, %v984
      %v986 = vpop.f32.mrf.mxu0
      %v987 = vpop.f32.mrf.mxu0
      %v988 = vadd.f32 %v324, %v987
      %v989 = vpop.f32.mrf.mxu0
      %990 = vmatprep.mubr.bf16.mxu0 0
      %991 = vmatmul.mubr.bf16.gmra.mxu0 %v607
      %v992 = vpop.f32.mrf.mxu0
      %v993 = vadd.f32 %v324, %v992
      %v994 = vpop.f32.mrf.mxu0
      %v995 = vpop.f32.mrf.mxu0
      %v996 = vadd.f32 %v324, %v995
      %v997 = vpop.f32.mrf.mxu0
      %998 = vmatprep.mubr.bf16.mxu0 0
      %999 = vmatmul.mubr.bf16.gmra.mxu0 %v608
      %v1000 = vpop.f32.mrf.mxu0
      %v1001 = vadd.f32 %v324, %v1000
      %v1002 = vpop.f32.mrf.mxu0
      %v1003 = vpop.f32.mrf.mxu0
      %v1004 = vadd.f32 %v324, %v1003
      %v1005 = vpop.f32.mrf.mxu0
      %1006 = vmatprep.mubr.bf16.mxu0 0
      %1007 = vmatmul.mubr.bf16.gmra.mxu0 %v609
      %v1008 = vpop.f32.mrf.mxu0
      %v1009 = vadd.f32 %v324, %v1008
      %v1010 = vpop.f32.mrf.mxu0
      %v1011 = vpop.f32.mrf.mxu0
      %v1012 = vadd.f32 %v324, %v1011
      %v1013 = vpop.f32.mrf.mxu0
      %1014 = vmatprep.mubr.bf16.mxu0 0
      %1015 = vmatmul.mubr.bf16.gmra.mxu0 %v610
      %v1016 = vpop.f32.mrf.mxu0
      %v1017 = vadd.f32 %v324, %v1016
      %v1018 = vpop.f32.mrf.mxu0
      %v1019 = vpop.f32.mrf.mxu0
      %v1020 = vadd.f32 %v324, %v1019
      %v1021 = vpop.f32.mrf.mxu0
      %1022 = vmatprep.mubr.bf16.mxu0 0
      %1023 = vmatmul.mubr.bf16.gmra.mxu0 %v611
      %v1024 = vpop.f32.mrf.mxu0
      %v1025 = vadd.f32 %v324, %v1024
      %v1026 = vpop.f32.mrf.mxu0
      %v1027 = vpop.f32.mrf.mxu0
      %v1028 = vadd.f32 %v324, %v1027
      %v1029 = vpop.f32.mrf.mxu0
      %1030 = vmatprep.mubr.bf16.mxu0 0
      %1031 = vmatmul.mubr.bf16.gmra.mxu0 %v612
      %v1032 = vpop.f32.mrf.mxu0
      %v1033 = vadd.f32 %v324, %v1032
      %v1034 = vpop.f32.mrf.mxu0
      %v1035 = vpop.f32.mrf.mxu0
      %v1036 = vadd.f32 %v324, %v1035
      %v1037 = vpop.f32.mrf.mxu0
      %1038 = vmatprep.mubr.bf16.mxu0 0
      %1039 = vmatmul.mubr.bf16.gmra.mxu0 %v613
      %v1040 = vpop.f32.mrf.mxu0
      %v1041 = vadd.f32 %v324, %v1040
      %v1042 = vpop.f32.mrf.mxu0
      %v1043 = vpop.f32.mrf.mxu0
      %v1044 = vadd.f32 %v324, %v1043
      %v1045 = vpop.f32.mrf.mxu0
      %1046 = vmatprep.mubr.bf16.mxu0 0
      %1047 = vmatmul.mubr.bf16.gmra.mxu0 %v614
      %v1048 = vpop.f32.mrf.mxu0
      %v1049 = vadd.f32 %v324, %v1048
      %v1050 = vpop.f32.mrf.mxu0
      %v1051 = vpop.f32.mrf.mxu0
      %v1052 = vadd.f32 %v324, %v1051
      %v1053 = vpop.f32.mrf.mxu0
      %1054 = vmatprep.mubr.bf16.mxu0 0
      %1055 = vmatmul.mubr.bf16.gmra.mxu0 %v615
      %v1056 = vpop.f32.mrf.mxu0
      %v1057 = vadd.f32 %v324, %v1056
      %v1058 = vpop.f32.mrf.mxu0
      %v1059 = vpop.f32.mrf.mxu0
      %v1060 = vadd.f32 %v324, %v1059
      %v1061 = vpop.f32.mrf.mxu0
      %1062 = vmatprep.mubr.bf16.mxu0 0
      %1063 = vmatmul.mubr.bf16.gmra.mxu0 %v616
      %v1064 = vpop.f32.mrf.mxu0
      %v1065 = vadd.f32 %v324, %v1064
      %v1066 = vpop.f32.mrf.mxu0
      %v1067 = vpop.f32.mrf.mxu0
      %v1068 = vadd.f32 %v324, %v1067
      %v1069 = vpop.f32.mrf.mxu0
      %1070 = vmatprep.mubr.bf16.mxu0 0
      %1071 = vmatmul.mubr.bf16.gmra.mxu0 %v617
      %v1072 = vpop.f32.mrf.mxu0
      %v1073 = vadd.f32 %v324, %v1072
      %v1074 = vpop.f32.mrf.mxu0
      %v1075 = vpop.f32.mrf.mxu0
      %v1076 = vadd.f32 %v324, %v1075
      %v1077 = vpop.f32.mrf.mxu0
      %1078 = vmatprep.mubr.bf16.mxu0 0
      %1079 = vmatmul.mubr.bf16.gmra.mxu0 %v618
      %v1080 = vpop.f32.mrf.mxu0
      %v1081 = vadd.f32 %v324, %v1080
      %v1082 = vpop.f32.mrf.mxu0
      %v1083 = vpop.f32.mrf.mxu0
      %v1084 = vadd.f32 %v324, %v1083
      %v1085 = vpop.f32.mrf.mxu0
      %1086 = vmatprep.mubr.bf16.mxu0 0
      %1087 = vmatmul.mubr.bf16.gmra.mxu0 %v619
      %v1088 = vpop.f32.mrf.mxu0
      %v1089 = vadd.f32 %v324, %v1088
      %v1090 = vpop.f32.mrf.mxu0
      %v1091 = vpop.f32.mrf.mxu0
      %v1092 = vadd.f32 %v324, %v1091
      %v1093 = vpop.f32.mrf.mxu0
      %1094 = vmatprep.mubr.bf16.mxu0 0
      %1095 = vmatmul.mubr.bf16.gmra.mxu0 %v620
      %v1096 = vpop.f32.mrf.mxu0
      %v1097 = vadd.f32 %v324, %v1096
      %v1098 = vpop.f32.mrf.mxu0
      %v1099 = vpop.f32.mrf.mxu0
      %v1100 = vadd.f32 %v324, %v1099
      %v1101 = vpop.f32.mrf.mxu0
      %1102 = vmatprep.mubr.bf16.mxu0 0
      %1103 = vmatmul.mubr.bf16.gmra.mxu0 %v621
      %v1104 = vpop.f32.mrf.mxu0
      %v1105 = vadd.f32 %v324, %v1104
      %v1106 = vpop.f32.mrf.mxu0
      %v1107 = vpop.f32.mrf.mxu0
      %v1108 = vadd.f32 %v324, %v1107
      %v1109 = vpop.f32.mrf.mxu0
      %1110 = vmatprep.mubr.bf16.mxu0 0
      %1111 = vmatmul.mubr.bf16.gmra.mxu0 %v622
      %v1112 = vpop.f32.mrf.mxu0
      %v1113 = vadd.f32 %v324, %v1112
      %v1114 = vpop.f32.mrf.mxu0
      %v1115 = vpop.f32.mrf.mxu0
      %v1116 = vadd.f32 %v324, %v1115
      %v1117 = vpop.f32.mrf.mxu0
      %1118 = vmatprep.mubr.bf16.mxu0 0
      %1119 = vmatmul.mubr.bf16.gmra.mxu0 %v623
      %v1120 = vpop.f32.mrf.mxu0
      %v1121 = vadd.f32 %v324, %v1120
      %v1122 = vpop.f32.mrf.mxu0
      %v1123 = vpop.f32.mrf.mxu0
      %v1124 = vadd.f32 %v324, %v1123
      %v1125 = vpop.f32.mrf.mxu0
      %1126 = vmatprep.mubr.bf16.mxu0 0
      %1127 = vmatmul.mubr.bf16.gmra.mxu0 %v624
      %v1128 = vpop.f32.mrf.mxu0
      %v1129 = vadd.f32 %v324, %v1128
      %v1130 = vpop.f32.mrf.mxu0
      %v1131 = vpop.f32.mrf.mxu0
      %v1132 = vadd.f32 %v324, %v1131
      %v1133 = vpop.f32.mrf.mxu0
      %1134 = vmatprep.mubr.bf16.mxu0 0
      %1135 = vmatmul.mubr.bf16.gmra.mxu0 %v625
      %v1136 = vpop.f32.mrf.mxu0
      %v1137 = vadd.f32 %v324, %v1136
      %v1138 = vpop.f32.mrf.mxu0
      %v1139 = vpop.f32.mrf.mxu0
      %v1140 = vadd.f32 %v324, %v1139
      %v1141 = vpop.f32.mrf.mxu0
      %1142 = vmatprep.mubr.bf16.mxu0 0
      %1143 = vmatmul.mubr.bf16.gmra.mxu0 %v626
      %v1144 = vpop.f32.mrf.mxu0
      %v1145 = vadd.f32 %v324, %v1144
      %v1146 = vpop.f32.mrf.mxu0
      %v1147 = vpop.f32.mrf.mxu0
      %v1148 = vadd.f32 %v324, %v1147
      %v1149 = vpop.f32.mrf.mxu0
      %1150 = vmatprep.mubr.bf16.mxu0 0
      %1151 = vmatmul.mubr.bf16.gmra.mxu0 %v627
      %v1152 = vpop.f32.mrf.mxu0
      %v1153 = vadd.f32 %v324, %v1152
      %v1154 = vpop.f32.mrf.mxu0
      %v1155 = vpop.f32.mrf.mxu0
      %v1156 = vadd.f32 %v324, %v1155
      %v1157 = vpop.f32.mrf.mxu0
      %1158 = vmatprep.mubr.bf16.mxu0 0
      %1159 = vmatmul.mubr.bf16.gmra.mxu0 %v628
      %v1160 = vpop.f32.mrf.mxu0
      %v1161 = vadd.f32 %v324, %v1160
      %v1162 = vpop.f32.mrf.mxu0
      %v1163 = vpop.f32.mrf.mxu0
      %v1164 = vadd.f32 %v324, %v1163
      %v1165 = vpop.f32.mrf.mxu0
      %1166 = vmatprep.mubr.bf16.mxu0 0
      %1167 = vmatmul.mubr.bf16.gmra.mxu0 %v629
      %v1168 = vpop.f32.mrf.mxu0
      %v1169 = vadd.f32 %v324, %v1168
      %v1170 = vpop.f32.mrf.mxu0
      %v1171 = vpop.f32.mrf.mxu0
      %v1172 = vadd.f32 %v324, %v1171
      %v1173 = vpop.f32.mrf.mxu0
      %1174 = vmatprep.mubr.bf16.mxu0 0
      %1175 = vmatmul.mubr.bf16.gmra.mxu0 %v630
      %v1176 = vpop.f32.mrf.mxu0
      %v1177 = vadd.f32 %v324, %v1176
      %v1178 = vpop.f32.mrf.mxu0
      %v1179 = vpop.f32.mrf.mxu0
      %v1180 = vadd.f32 %v324, %v1179
      %v1181 = vpop.f32.mrf.mxu0
      %1182 = vmatprep.mubr.bf16.mxu0 0
      %1183 = vmatmul.mubr.bf16.gmra.mxu0 %v631
      %v1184 = vpop.f32.mrf.mxu0
      %v1185 = vadd.f32 %v324, %v1184
      %v1186 = vpop.f32.mrf.mxu0
      %v1187 = vpop.f32.mrf.mxu0
      %v1188 = vadd.f32 %v324, %v1187
      %v1189 = vpop.f32.mrf.mxu0
      %1190 = vmatprep.mubr.bf16.mxu0 0
      %1191 = vmatmul.mubr.bf16.gmra.mxu0 %v632
      %v1192 = vpop.f32.mrf.mxu0
      %v1193 = vadd.f32 %v324, %v1192
      %v1194 = vpop.f32.mrf.mxu0
      %v1195 = vpop.f32.mrf.mxu0
      %v1196 = vadd.f32 %v324, %v1195
      %v1197 = vpop.f32.mrf.mxu0
      %1198 = vmatprep.mubr.bf16.mxu0 0
      %1199 = vmatmul.mubr.bf16.gmra.mxu0 %v633
      %v1200 = vpop.f32.mrf.mxu0
      %v1201 = vadd.f32 %v324, %v1200
      %v1202 = vpop.f32.mrf.mxu0
      %v1203 = vpop.f32.mrf.mxu0
      %v1204 = vadd.f32 %v324, %v1203
      %v1205 = vpop.f32.mrf.mxu0
      %1206 = vmatprep.mubr.bf16.mxu0 0
      %1207 = vmatmul.mubr.bf16.gmra.mxu0 %v634
      %v1208 = vpop.f32.mrf.mxu0
      %v1209 = vadd.f32 %v324, %v1208
      %v1210 = vpop.f32.mrf.mxu0
      %v1211 = vpop.f32.mrf.mxu0
      %v1212 = vadd.f32 %v324, %v1211
      %v1213 = vpop.f32.mrf.mxu0
      %1214 = vmatprep.mubr.bf16.mxu0 0
      %1215 = vmatmul.mubr.bf16.gmra.mxu0 %v635
      %v1216 = vpop.f32.mrf.mxu0
      %v1217 = vadd.f32 %v324, %v1216
      %v1218 = vpop.f32.mrf.mxu0
      %v1219 = vpop.f32.mrf.mxu0
      %v1220 = vadd.f32 %v324, %v1219
      %v1221 = vpop.f32.mrf.mxu0
      %1222 = vmatprep.mubr.bf16.mxu0 0
      %1223 = vmatmul.mubr.bf16.gmra.mxu0 %v636
      %v1224 = vpop.f32.mrf.mxu0
      %v1225 = vadd.f32 %v324, %v1224
      %v1226 = vpop.f32.mrf.mxu0
      %v1227 = vpop.f32.mrf.mxu0
      %v1228 = vadd.f32 %v324, %v1227
      %v1229 = vpop.f32.mrf.mxu0
      %1230 = vmatprep.mubr.bf16.mxu0 0
      %1231 = vmatmul.mubr.bf16.gmra.mxu0 %v637
      %v1232 = vpop.f32.mrf.mxu0
      %v1233 = vadd.f32 %v324, %v1232
      %v1234 = vpop.f32.mrf.mxu0
      %v1235 = vpop.f32.mrf.mxu0
      %v1236 = vadd.f32 %v324, %v1235
      %v1237 = vpop.f32.mrf.mxu0
      %1238 = vmatprep.mubr.bf16.mxu0 0
      %1239 = vmatmul.mubr.bf16.gmra.mxu0 %v638
      %v1240 = vpop.f32.mrf.mxu0
      %v1241 = vadd.f32 %v324, %v1240
      %v1242 = vpop.f32.mrf.mxu0
      %v1243 = vpop.f32.mrf.mxu0
      %v1244 = vadd.f32 %v324, %v1243
      %v1245 = vpop.f32.mrf.mxu0
      %1246 = vmatprep.mubr.bf16.mxu0 0
      %1247 = vmatmul.mubr.bf16.gmra.mxu0 %v639
      %v1248 = vpop.f32.mrf.mxu0
      %v1249 = vadd.f32 %v324, %v1248
      %v1250 = vpop.f32.mrf.mxu0
      %v1251 = vpop.f32.mrf.mxu0
      %v1252 = vadd.f32 %v324, %v1251
      %v1253 = vpop.f32.mrf.mxu0
      %1254 = vmatprep.mubr.bf16.mxu0 0
      %1255 = vmatmul.mubr.bf16.gmra.mxu0 %v640
      %v1256 = vpop.f32.mrf.mxu0
      %v1257 = vadd.f32 %v324, %v1256
      %v1258 = vpop.f32.mrf.mxu0
      %v1259 = vpop.f32.mrf.mxu0
      %v1260 = vadd.f32 %v324, %v1259
      %v1261 = vpop.f32.mrf.mxu0
      %1262 = vmatprep.mubr.bf16.mxu0 0
      %1263 = vmatmul.mubr.bf16.gmra.mxu0 %v641
      %v1264 = vpop.f32.mrf.mxu0
      %v1265 = vadd.f32 %v324, %v1264
      %v1266 = vpop.f32.mrf.mxu0
      %v1267 = vpop.f32.mrf.mxu0
      %v1268 = vadd.f32 %v324, %v1267
      %v1269 = vpop.f32.mrf.mxu0
      %1270 = vmatprep.mubr.bf16.mxu0 0
      %1271 = vmatmul.mubr.bf16.gmra.mxu0 %v642
      %v1272 = vpop.f32.mrf.mxu0
      %v1273 = vadd.f32 %v324, %v1272
      %v1274 = vpop.f32.mrf.mxu0
      %v1275 = vpop.f32.mrf.mxu0
      %v1276 = vadd.f32 %v324, %v1275
      %v1277 = vpop.f32.mrf.mxu0
      %1278 = vmatprep.mubr.bf16.mxu0 0
      %1279 = vmatmul.mubr.bf16.gmra.mxu0 %v643
      %v1280 = vpop.f32.mrf.mxu0
      %v1281 = vadd.f32 %v324, %v1280
      %v1282 = vpop.f32.mrf.mxu0
      %v1283 = vpop.f32.mrf.mxu0
      %v1284 = vadd.f32 %v324, %v1283
      %v1285 = vpop.f32.mrf.mxu0
      %1286 = vmatprep.mubr.bf16.mxu0 0
      %1287 = vmatmul.mubr.bf16.gmra.mxu0 %v644
      %v1288 = vpop.f32.mrf.mxu0
      %v1289 = vadd.f32 %v324, %v1288
      %v1290 = vpop.f32.mrf.mxu0
      %v1291 = vpop.f32.mrf.mxu0
      %v1292 = vadd.f32 %v324, %v1291
      %v1293 = vpop.f32.mrf.mxu0
      %1294 = vmatprep.mubr.bf16.mxu0 0
      %1295 = vmatmul.mubr.bf16.gmra.mxu0 %v645
      %v1296 = vpop.f32.mrf.mxu0
      %v1297 = vadd.f32 %v324, %v1296
      %v1298 = vpop.f32.mrf.mxu0
      %v1299 = vpop.f32.mrf.mxu0
      %v1300 = vadd.f32 %v324, %v1299
      %v1301 = vpop.f32.mrf.mxu0
      %1302 = vdwg.mxu0
      %v1303 = vmax.f32 %v793, 0.0
      %v1304 = vmax.f32 %v796, 0.0
      %v1305 = vmax.f32 %v801, 0.0
      %v1306 = vmax.f32 %v804, 0.0
      %v1307 = vmax.f32 %v809, 0.0
      %v1308 = vmax.f32 %v812, 0.0
      %v1309 = vmax.f32 %v817, 0.0
      %v1310 = vmax.f32 %v820, 0.0
      %v1311 = vmax.f32 %v825, 0.0
      %v1312 = vmax.f32 %v828, 0.0
      %v1313 = vmax.f32 %v833, 0.0
      %v1314 = vmax.f32 %v836, 0.0
      %v1315 = vmax.f32 %v841, 0.0
      %v1316 = vmax.f32 %v844, 0.0
      %v1317 = vmax.f32 %v849, 0.0
      %v1318 = vmax.f32 %v852, 0.0
      %v1319 = vmax.f32 %v857, 0.0
      %v1320 = vmax.f32 %v860, 0.0
      %v1321 = vmax.f32 %v865, 0.0
      %v1322 = vmax.f32 %v868, 0.0
      %v1323 = vmax.f32 %v873, 0.0
      %v1324 = vmax.f32 %v876, 0.0
      %v1325 = vmax.f32 %v881, 0.0
      %v1326 = vmax.f32 %v884, 0.0
      %v1327 = vmax.f32 %v889, 0.0
      %v1328 = vmax.f32 %v892, 0.0
      %v1329 = vmax.f32 %v897, 0.0
      %v1330 = vmax.f32 %v900, 0.0
      %v1331 = vmax.f32 %v905, 0.0
      %v1332 = vmax.f32 %v908, 0.0
      %v1333 = vmax.f32 %v913, 0.0
      %v1334 = vmax.f32 %v916, 0.0
      %v1335 = vmax.f32 %v921, 0.0
      %v1336 = vmax.f32 %v924, 0.0
      %v1337 = vmax.f32 %v929, 0.0
      %v1338 = vmax.f32 %v932, 0.0
      %v1339 = vmax.f32 %v937, 0.0
      %v1340 = vmax.f32 %v940, 0.0
      %v1341 = vmax.f32 %v945, 0.0
      %v1342 = vmax.f32 %v948, 0.0
      %v1343 = vmax.f32 %v953, 0.0
      %v1344 = vmax.f32 %v956, 0.0
      %v1345 = vmax.f32 %v961, 0.0
      %v1346 = vmax.f32 %v964, 0.0
      %v1347 = vmax.f32 %v969, 0.0
      %v1348 = vmax.f32 %v972, 0.0
      %v1349 = vmax.f32 %v977, 0.0
      %v1350 = vmax.f32 %v980, 0.0
      %v1351 = vmax.f32 %v985, 0.0
      %v1352 = vmax.f32 %v988, 0.0
      %v1353 = vmax.f32 %v993, 0.0
      %v1354 = vmax.f32 %v996, 0.0
      %v1355 = vmax.f32 %v1001, 0.0
      %v1356 = vmax.f32 %v1004, 0.0
      %v1357 = vmax.f32 %v1009, 0.0
      %v1358 = vmax.f32 %v1012, 0.0
      %v1359 = vmax.f32 %v1017, 0.0
      %v1360 = vmax.f32 %v1020, 0.0
      %v1361 = vmax.f32 %v1025, 0.0
      %v1362 = vmax.f32 %v1028, 0.0
      %v1363 = vmax.f32 %v1033, 0.0
      %v1364 = vmax.f32 %v1036, 0.0
      %v1365 = vmax.f32 %v1041, 0.0
      %v1366 = vmax.f32 %v1044, 0.0
      %v1367 = vmax.f32 %v1049, 0.0
      %v1368 = vmax.f32 %v1052, 0.0
      %v1369 = vmax.f32 %v1057, 0.0
      %v1370 = vmax.f32 %v1060, 0.0
      %v1371 = vmax.f32 %v1065, 0.0
      %v1372 = vmax.f32 %v1068, 0.0
      %v1373 = vmax.f32 %v1073, 0.0
      %v1374 = vmax.f32 %v1076, 0.0
      %v1375 = vmax.f32 %v1081, 0.0
      %v1376 = vmax.f32 %v1084, 0.0
      %v1377 = vmax.f32 %v1089, 0.0
      %v1378 = vmax.f32 %v1092, 0.0
      %v1379 = vmax.f32 %v1097, 0.0
      %v1380 = vmax.f32 %v1100, 0.0
      %v1381 = vmax.f32 %v1105, 0.0
      %v1382 = vmax.f32 %v1108, 0.0
      %v1383 = vmax.f32 %v1113, 0.0
      %v1384 = vmax.f32 %v1116, 0.0
      %v1385 = vmax.f32 %v1121, 0.0
      %v1386 = vmax.f32 %v1124, 0.0
      %v1387 = vmax.f32 %v1129, 0.0
      %v1388 = vmax.f32 %v1132, 0.0
      %v1389 = vmax.f32 %v1137, 0.0
      %v1390 = vmax.f32 %v1140, 0.0
      %v1391 = vmax.f32 %v1145, 0.0
      %v1392 = vmax.f32 %v1148, 0.0
      %v1393 = vmax.f32 %v1153, 0.0
      %v1394 = vmax.f32 %v1156, 0.0
      %v1395 = vmax.f32 %v1161, 0.0
      %v1396 = vmax.f32 %v1164, 0.0
      %v1397 = vmax.f32 %v1169, 0.0
      %v1398 = vmax.f32 %v1172, 0.0
      %v1399 = vmax.f32 %v1177, 0.0
      %v1400 = vmax.f32 %v1180, 0.0
      %v1401 = vmax.f32 %v1185, 0.0
      %v1402 = vmax.f32 %v1188, 0.0
      %v1403 = vmax.f32 %v1193, 0.0
      %v1404 = vmax.f32 %v1196, 0.0
      %v1405 = vmax.f32 %v1201, 0.0
      %v1406 = vmax.f32 %v1204, 0.0
      %v1407 = vmax.f32 %v1209, 0.0
      %v1408 = vmax.f32 %v1212, 0.0
      %v1409 = vmax.f32 %v1217, 0.0
      %v1410 = vmax.f32 %v1220, 0.0
      %v1411 = vmax.f32 %v1225, 0.0
      %v1412 = vmax.f32 %v1228, 0.0
      %v1413 = vmax.f32 %v1233, 0.0
      %v1414 = vmax.f32 %v1236, 0.0
      %v1415 = vmax.f32 %v1241, 0.0
      %v1416 = vmax.f32 %v1244, 0.0
      %v1417 = vmax.f32 %v1249, 0.0
      %v1418 = vmax.f32 %v1252, 0.0
      %v1419 = vmax.f32 %v1257, 0.0
      %v1420 = vmax.f32 %v1260, 0.0
      %v1421 = vmax.f32 %v1265, 0.0
      %v1422 = vmax.f32 %v1268, 0.0
      %v1423 = vmax.f32 %v1273, 0.0
      %v1424 = vmax.f32 %v1276, 0.0
      %v1425 = vmax.f32 %v1281, 0.0
      %v1426 = vmax.f32 %v1284, 0.0
      %v1427 = vmax.f32 %v1289, 0.0
      %v1428 = vmax.f32 %v1292, 0.0
      %v1429 = vmax.f32 %v1297, 0.0
      %v1430 = vmax.f32 %v1300, 0.0
      %v1431 = vpack.c.bf16 %v1304, %v1303
      %v1432 = vpack.c.bf16 %v1306, %v1305
      %v1433 = vpack.c.bf16 %v1308, %v1307
      %v1434 = vpack.c.bf16 %v1310, %v1309
      %v1435 = vpack.c.bf16 %v1312, %v1311
      %v1436 = vpack.c.bf16 %v1314, %v1313
      %v1437 = vpack.c.bf16 %v1316, %v1315
      %v1438 = vpack.c.bf16 %v1318, %v1317
      %v1439 = vpack.c.bf16 %v1320, %v1319
      %v1440 = vpack.c.bf16 %v1322, %v1321
      %v1441 = vpack.c.bf16 %v1324, %v1323
      %v1442 = vpack.c.bf16 %v1326, %v1325
      %v1443 = vpack.c.bf16 %v1328, %v1327
      %v1444 = vpack.c.bf16 %v1330, %v1329
      %v1445 = vpack.c.bf16 %v1332, %v1331
      %v1446 = vpack.c.bf16 %v1334, %v1333
      %v1447 = vpack.c.bf16 %v1336, %v1335
      %v1448 = vpack.c.bf16 %v1338, %v1337
      %v1449 = vpack.c.bf16 %v1340, %v1339
      %v1450 = vpack.c.bf16 %v1342, %v1341
      %v1451 = vpack.c.bf16 %v1344, %v1343
      %v1452 = vpack.c.bf16 %v1346, %v1345
      %v1453 = vpack.c.bf16 %v1348, %v1347
      %v1454 = vpack.c.bf16 %v1350, %v1349
      %v1455 = vpack.c.bf16 %v1352, %v1351
      %v1456 = vpack.c.bf16 %v1354, %v1353
      %v1457 = vpack.c.bf16 %v1356, %v1355
      %v1458 = vpack.c.bf16 %v1358, %v1357
      %v1459 = vpack.c.bf16 %v1360, %v1359
      %v1460 = vpack.c.bf16 %v1362, %v1361
      %v1461 = vpack.c.bf16 %v1364, %v1363
      %v1462 = vpack.c.bf16 %v1366, %v1365
      %v1463 = vpack.c.bf16 %v1368, %v1367
      %v1464 = vpack.c.bf16 %v1370, %v1369
      %v1465 = vpack.c.bf16 %v1372, %v1371
      %v1466 = vpack.c.bf16 %v1374, %v1373
      %v1467 = vpack.c.bf16 %v1376, %v1375
      %v1468 = vpack.c.bf16 %v1378, %v1377
      %v1469 = vpack.c.bf16 %v1380, %v1379
      %v1470 = vpack.c.bf16 %v1382, %v1381
      %v1471 = vpack.c.bf16 %v1384, %v1383
      %v1472 = vpack.c.bf16 %v1386, %v1385
      %v1473 = vpack.c.bf16 %v1388, %v1387
      %v1474 = vpack.c.bf16 %v1390, %v1389
      %v1475 = vpack.c.bf16 %v1392, %v1391
      %v1476 = vpack.c.bf16 %v1394, %v1393
      %v1477 = vpack.c.bf16 %v1396, %v1395
      %v1478 = vpack.c.bf16 %v1398, %v1397
      %v1479 = vpack.c.bf16 %v1400, %v1399
      %v1480 = vpack.c.bf16 %v1402, %v1401
      %v1481 = vpack.c.bf16 %v1404, %v1403
      %v1482 = vpack.c.bf16 %v1406, %v1405
      %v1483 = vpack.c.bf16 %v1408, %v1407
      %v1484 = vpack.c.bf16 %v1410, %v1409
      %v1485 = vpack.c.bf16 %v1412, %v1411
      %v1486 = vpack.c.bf16 %v1414, %v1413
      %v1487 = vpack.c.bf16 %v1416, %v1415
      %v1488 = vpack.c.bf16 %v1418, %v1417
      %v1489 = vpack.c.bf16 %v1420, %v1419
      %v1490 = vpack.c.bf16 %v1422, %v1421
      %v1491 = vpack.c.bf16 %v1424, %v1423
      %v1492 = vpack.c.bf16 %v1426, %v1425
      %v1493 = vpack.c.bf16 %v1428, %v1427
      %v1494 = vpack.c.bf16 %v1430, %v1429
      %v1559 = vunpack.c.l.b16 %v1431
      %v1560 = vunpack.c.h.b16 %v1431
      %v1561 = vunpack.c.l.b16 %v1432
      %v1562 = vunpack.c.h.b16 %v1432
      %v1563 = vunpack.c.l.b16 %v1433
      %v1564 = vunpack.c.h.b16 %v1433
      %v1565 = vunpack.c.l.b16 %v1434
      %v1566 = vunpack.c.h.b16 %v1434
      %v1567 = vunpack.c.l.b16 %v1435
      %v1568 = vunpack.c.h.b16 %v1435
      %v1569 = vunpack.c.l.b16 %v1436
      %v1570 = vunpack.c.h.b16 %v1436
      %v1571 = vunpack.c.l.b16 %v1437
      %v1572 = vunpack.c.h.b16 %v1437
      %v1573 = vunpack.c.l.b16 %v1438
      %v1574 = vunpack.c.h.b16 %v1438
      %v1575 = vunpack.c.l.b16 %v1439
      %v1576 = vunpack.c.h.b16 %v1439
      %v1577 = vunpack.c.l.b16 %v1440
      %v1578 = vunpack.c.h.b16 %v1440
      %v1579 = vunpack.c.l.b16 %v1441
      %v1580 = vunpack.c.h.b16 %v1441
      %v1581 = vunpack.c.l.b16 %v1442
      %v1582 = vunpack.c.h.b16 %v1442
      %v1583 = vunpack.c.l.b16 %v1443
      %v1584 = vunpack.c.h.b16 %v1443
      %v1585 = vunpack.c.l.b16 %v1444
      %v1586 = vunpack.c.h.b16 %v1444
      %v1587 = vunpack.c.l.b16 %v1445
      %v1588 = vunpack.c.h.b16 %v1445
      %v1589 = vunpack.c.l.b16 %v1446
      %v1590 = vunpack.c.h.b16 %v1446
      %v1591 = vunpack.c.l.b16 %v1447
      %v1592 = vunpack.c.h.b16 %v1447
      %v1593 = vunpack.c.l.b16 %v1448
      %v1594 = vunpack.c.h.b16 %v1448
      %v1595 = vunpack.c.l.b16 %v1449
      %v1596 = vunpack.c.h.b16 %v1449
      %v1597 = vunpack.c.l.b16 %v1450
      %v1598 = vunpack.c.h.b16 %v1450
      %v1599 = vunpack.c.l.b16 %v1451
      %v1600 = vunpack.c.h.b16 %v1451
      %v1601 = vunpack.c.l.b16 %v1452
      %v1602 = vunpack.c.h.b16 %v1452
      %v1603 = vunpack.c.l.b16 %v1453
      %v1604 = vunpack.c.h.b16 %v1453
      %v1605 = vunpack.c.l.b16 %v1454
      %v1606 = vunpack.c.h.b16 %v1454
      %v1607 = vunpack.c.l.b16 %v1455
      %v1608 = vunpack.c.h.b16 %v1455
      %v1609 = vunpack.c.l.b16 %v1456
      %v1610 = vunpack.c.h.b16 %v1456
      %v1611 = vunpack.c.l.b16 %v1457
      %v1612 = vunpack.c.h.b16 %v1457
      %v1613 = vunpack.c.l.b16 %v1458
      %v1614 = vunpack.c.h.b16 %v1458
      %v1615 = vunpack.c.l.b16 %v1459
      %v1616 = vunpack.c.h.b16 %v1459
      %v1617 = vunpack.c.l.b16 %v1460
      %v1618 = vunpack.c.h.b16 %v1460
      %v1619 = vunpack.c.l.b16 %v1461
      %v1620 = vunpack.c.h.b16 %v1461
      %v1621 = vunpack.c.l.b16 %v1462
      %v1622 = vunpack.c.h.b16 %v1462
      %v1623 = vunpack.c.l.b16 %v1463
      %v1624 = vunpack.c.h.b16 %v1463
      %v1625 = vunpack.c.l.b16 %v1464
      %v1626 = vunpack.c.h.b16 %v1464
      %v1627 = vunpack.c.l.b16 %v1465
      %v1628 = vunpack.c.h.b16 %v1465
      %v1629 = vunpack.c.l.b16 %v1466
      %v1630 = vunpack.c.h.b16 %v1466
      %v1631 = vunpack.c.l.b16 %v1467
      %v1632 = vunpack.c.h.b16 %v1467
      %v1633 = vunpack.c.l.b16 %v1468
      %v1634 = vunpack.c.h.b16 %v1468
      %v1635 = vunpack.c.l.b16 %v1469
      %v1636 = vunpack.c.h.b16 %v1469
      %v1637 = vunpack.c.l.b16 %v1470
      %v1638 = vunpack.c.h.b16 %v1470
      %v1639 = vunpack.c.l.b16 %v1471
      %v1640 = vunpack.c.h.b16 %v1471
      %v1641 = vunpack.c.l.b16 %v1472
      %v1642 = vunpack.c.h.b16 %v1472
      %v1643 = vunpack.c.l.b16 %v1473
      %v1644 = vunpack.c.h.b16 %v1473
      %v1645 = vunpack.c.l.b16 %v1474
      %v1646 = vunpack.c.h.b16 %v1474
      %v1647 = vunpack.c.l.b16 %v1475
      %v1648 = vunpack.c.h.b16 %v1475
      %v1649 = vunpack.c.l.b16 %v1476
      %v1650 = vunpack.c.h.b16 %v1476
      %v1651 = vunpack.c.l.b16 %v1477
      %v1652 = vunpack.c.h.b16 %v1477
      %v1653 = vunpack.c.l.b16 %v1478
      %v1654 = vunpack.c.h.b16 %v1478
      %v1655 = vunpack.c.l.b16 %v1479
      %v1656 = vunpack.c.h.b16 %v1479
      %v1657 = vunpack.c.l.b16 %v1480
      %v1658 = vunpack.c.h.b16 %v1480
      %v1659 = vunpack.c.l.b16 %v1481
      %v1660 = vunpack.c.h.b16 %v1481
      %v1661 = vunpack.c.l.b16 %v1482
      %v1662 = vunpack.c.h.b16 %v1482
      %v1663 = vunpack.c.l.b16 %v1483
      %v1664 = vunpack.c.h.b16 %v1483
      %v1665 = vunpack.c.l.b16 %v1484
      %v1666 = vunpack.c.h.b16 %v1484
      %v1667 = vunpack.c.l.b16 %v1485
      %v1668 = vunpack.c.h.b16 %v1485
      %v1669 = vunpack.c.l.b16 %v1486
      %v1670 = vunpack.c.h.b16 %v1486
      %v1671 = vunpack.c.l.b16 %v1487
      %v1672 = vunpack.c.h.b16 %v1487
      %v1673 = vunpack.c.l.b16 %v1488
      %v1674 = vunpack.c.h.b16 %v1488
      %v1675 = vunpack.c.l.b16 %v1489
      %v1676 = vunpack.c.h.b16 %v1489
      %v1677 = vunpack.c.l.b16 %v1490
      %v1678 = vunpack.c.h.b16 %v1490
      %v1679 = vunpack.c.l.b16 %v1491
      %v1680 = vunpack.c.h.b16 %v1491
      %v1681 = vunpack.c.l.b16 %v1492
      %v1682 = vunpack.c.h.b16 %v1492
      %v1683 = vunpack.c.l.b16 %v1493
      %v1684 = vunpack.c.h.b16 %v1493
      %v1685 = vunpack.c.l.b16 %v1494
      %v1686 = vunpack.c.h.b16 %v1494
      %v1687 = vpack.c.b16 %v1559, %v1559
      %v1688 = vpack.c.b16 %v1560, %v1560
      %v1689 = vpack.c.b16 %v1561, %v1561
      %v1690 = vpack.c.b16 %v1562, %v1562
      %v1691 = vpack.c.b16 %v1563, %v1563
      %v1692 = vpack.c.b16 %v1564, %v1564
      %v1693 = vpack.c.b16 %v1565, %v1565
      %v1694 = vpack.c.b16 %v1566, %v1566
      %v1695 = vpack.c.b16 %v1567, %v1567
      %v1696 = vpack.c.b16 %v1568, %v1568
      %v1697 = vpack.c.b16 %v1569, %v1569
      %v1698 = vpack.c.b16 %v1570, %v1570
      %v1699 = vpack.c.b16 %v1571, %v1571
      %v1700 = vpack.c.b16 %v1572, %v1572
      %v1701 = vpack.c.b16 %v1573, %v1573
      %v1702 = vpack.c.b16 %v1574, %v1574
      %v1703 = vpack.c.b16 %v1575, %v1575
      %v1704 = vpack.c.b16 %v1576, %v1576
      %v1705 = vpack.c.b16 %v1577, %v1577
      %v1706 = vpack.c.b16 %v1578, %v1578
      %v1707 = vpack.c.b16 %v1579, %v1579
      %v1708 = vpack.c.b16 %v1580, %v1580
      %v1709 = vpack.c.b16 %v1581, %v1581
      %v1710 = vpack.c.b16 %v1582, %v1582
      %v1711 = vpack.c.b16 %v1583, %v1583
      %v1712 = vpack.c.b16 %v1584, %v1584
      %v1713 = vpack.c.b16 %v1585, %v1585
      %v1714 = vpack.c.b16 %v1586, %v1586
      %v1715 = vpack.c.b16 %v1587, %v1587
      %v1716 = vpack.c.b16 %v1588, %v1588
      %v1717 = vpack.c.b16 %v1589, %v1589
      %v1718 = vpack.c.b16 %v1590, %v1590
      %v1719 = vpack.c.b16 %v1591, %v1591
      %v1720 = vpack.c.b16 %v1592, %v1592
      %v1721 = vpack.c.b16 %v1593, %v1593
      %v1722 = vpack.c.b16 %v1594, %v1594
      %v1723 = vpack.c.b16 %v1595, %v1595
      %v1724 = vpack.c.b16 %v1596, %v1596
      %v1725 = vpack.c.b16 %v1597, %v1597
      %v1726 = vpack.c.b16 %v1598, %v1598
      %v1727 = vpack.c.b16 %v1599, %v1599
      %v1728 = vpack.c.b16 %v1600, %v1600
      %v1729 = vpack.c.b16 %v1601, %v1601
      %v1730 = vpack.c.b16 %v1602, %v1602
      %v1731 = vpack.c.b16 %v1603, %v1603
      %v1732 = vpack.c.b16 %v1604, %v1604
      %v1733 = vpack.c.b16 %v1605, %v1605
      %v1734 = vpack.c.b16 %v1606, %v1606
      %v1735 = vpack.c.b16 %v1607, %v1607
      %v1736 = vpack.c.b16 %v1608, %v1608
      %v1737 = vpack.c.b16 %v1609, %v1609
      %v1738 = vpack.c.b16 %v1610, %v1610
      %v1739 = vpack.c.b16 %v1611, %v1611
      %v1740 = vpack.c.b16 %v1612, %v1612
      %v1741 = vpack.c.b16 %v1613, %v1613
      %v1742 = vpack.c.b16 %v1614, %v1614
      %v1743 = vpack.c.b16 %v1615, %v1615
      %v1744 = vpack.c.b16 %v1616, %v1616
      %v1745 = vpack.c.b16 %v1617, %v1617
      %v1746 = vpack.c.b16 %v1618, %v1618
      %v1747 = vpack.c.b16 %v1619, %v1619
      %v1748 = vpack.c.b16 %v1620, %v1620
      %v1749 = vpack.c.b16 %v1621, %v1621
      %v1750 = vpack.c.b16 %v1622, %v1622
      %v1751 = vpack.c.b16 %v1623, %v1623
      %v1752 = vpack.c.b16 %v1624, %v1624
      %v1753 = vpack.c.b16 %v1625, %v1625
      %v1754 = vpack.c.b16 %v1626, %v1626
      %v1755 = vpack.c.b16 %v1627, %v1627
      %v1756 = vpack.c.b16 %v1628, %v1628
      %v1757 = vpack.c.b16 %v1629, %v1629
      %v1758 = vpack.c.b16 %v1630, %v1630
      %v1759 = vpack.c.b16 %v1631, %v1631
      %v1760 = vpack.c.b16 %v1632, %v1632
      %v1761 = vpack.c.b16 %v1633, %v1633
      %v1762 = vpack.c.b16 %v1634, %v1634
      %v1763 = vpack.c.b16 %v1635, %v1635
      %v1764 = vpack.c.b16 %v1636, %v1636
      %v1765 = vpack.c.b16 %v1637, %v1637
      %v1766 = vpack.c.b16 %v1638, %v1638
      %v1767 = vpack.c.b16 %v1639, %v1639
      %v1768 = vpack.c.b16 %v1640, %v1640
      %v1769 = vpack.c.b16 %v1641, %v1641
      %v1770 = vpack.c.b16 %v1642, %v1642
      %v1771 = vpack.c.b16 %v1643, %v1643
      %v1772 = vpack.c.b16 %v1644, %v1644
      %v1773 = vpack.c.b16 %v1645, %v1645
      %v1774 = vpack.c.b16 %v1646, %v1646
      %v1775 = vpack.c.b16 %v1647, %v1647
      %v1776 = vpack.c.b16 %v1648, %v1648
      %v1777 = vpack.c.b16 %v1649, %v1649
      %v1778 = vpack.c.b16 %v1650, %v1650
      %v1779 = vpack.c.b16 %v1651, %v1651
      %v1780 = vpack.c.b16 %v1652, %v1652
      %v1781 = vpack.c.b16 %v1653, %v1653
      %v1782 = vpack.c.b16 %v1654, %v1654
      %v1783 = vpack.c.b16 %v1655, %v1655
      %v1784 = vpack.c.b16 %v1656, %v1656
      %v1785 = vpack.c.b16 %v1657, %v1657
      %v1786 = vpack.c.b16 %v1658, %v1658
      %v1787 = vpack.c.b16 %v1659, %v1659
      %v1788 = vpack.c.b16 %v1660, %v1660
      %v1789 = vpack.c.b16 %v1661, %v1661
      %v1790 = vpack.c.b16 %v1662, %v1662
      %v1791 = vpack.c.b16 %v1663, %v1663
      %v1792 = vpack.c.b16 %v1664, %v1664
      %v1793 = vpack.c.b16 %v1665, %v1665
      %v1794 = vpack.c.b16 %v1666, %v1666
      %v1795 = vpack.c.b16 %v1667, %v1667
      %v1796 = vpack.c.b16 %v1668, %v1668
      %v1797 = vpack.c.b16 %v1669, %v1669
      %v1798 = vpack.c.b16 %v1670, %v1670
      %v1799 = vpack.c.b16 %v1671, %v1671
      %v1800 = vpack.c.b16 %v1672, %v1672
      %v1801 = vpack.c.b16 %v1673, %v1673
      %v1802 = vpack.c.b16 %v1674, %v1674
      %v1803 = vpack.c.b16 %v1675, %v1675
      %v1804 = vpack.c.b16 %v1676, %v1676
      %v1805 = vpack.c.b16 %v1677, %v1677
      %v1806 = vpack.c.b16 %v1678, %v1678
      %v1807 = vpack.c.b16 %v1679, %v1679
      %v1808 = vpack.c.b16 %v1680, %v1680
      %v1809 = vpack.c.b16 %v1681, %v1681
      %v1810 = vpack.c.b16 %v1682, %v1682
      %v1811 = vpack.c.b16 %v1683, %v1683
      %v1812 = vpack.c.b16 %v1684, %v1684
      %v1813 = vpack.c.b16 %v1685, %v1685
      %v1814 = vpack.c.b16 %v1686, %v1686
      %1943 = vst [vmem:[%s172] sm:$0xf] %v1687
      %1944 = vst [vmem:[%s172 + $0x4] sm:$0xf] %v1688
      %1945 = vst [vmem:[%s172 + $0x8] sm:$0xf] %v1689
      %1946 = vst [vmem:[%s172 + $0xc] sm:$0xf] %v1690
      %1947 = vst [vmem:[%s172 + $0x10] sm:$0xf] %v1691
      %1948 = vst [vmem:[%s172 + $0x14] sm:$0xf] %v1692
      %1949 = vst [vmem:[%s172 + $0x18] sm:$0xf] %v1693
      %1950 = vst [vmem:[%s172 + $0x1c] sm:$0xf] %v1694
      %1951 = vst [vmem:[%s172 + $0x20] sm:$0xf] %v1695
      %1952 = vst [vmem:[%s172 + $0x24] sm:$0xf] %v1696
      %1953 = vst [vmem:[%s172 + $0x28] sm:$0xf] %v1697
      %1954 = vst [vmem:[%s172 + $0x2c] sm:$0xf] %v1698
      %1955 = vst [vmem:[%s172 + $0x30] sm:$0xf] %v1699
      %1956 = vst [vmem:[%s172 + $0x34] sm:$0xf] %v1700
      %1957 = vst [vmem:[%s172 + $0x38] sm:$0xf] %v1701
      %1958 = vst [vmem:[%s172 + $0x3c] sm:$0xf] %v1702
      %1959 = vst [vmem:[%s172 + $0x40] sm:$0xf] %v1703
      %1960 = vst [vmem:[%s172 + $0x44] sm:$0xf] %v1704
      %1961 = vst [vmem:[%s172 + $0x48] sm:$0xf] %v1705
      %1962 = vst [vmem:[%s172 + $0x4c] sm:$0xf] %v1706
      %1963 = vst [vmem:[%s172 + $0x50] sm:$0xf] %v1707
      %1964 = vst [vmem:[%s172 + $0x54] sm:$0xf] %v1708
      %1965 = vst [vmem:[%s172 + $0x58] sm:$0xf] %v1709
      %1966 = vst [vmem:[%s172 + $0x5c] sm:$0xf] %v1710
      %1967 = vst [vmem:[%s172 + $0x60] sm:$0xf] %v1711
      %1968 = vst [vmem:[%s172 + $0x64] sm:$0xf] %v1712
      %1969 = vst [vmem:[%s172 + $0x68] sm:$0xf] %v1713
      %1970 = vst [vmem:[%s172 + $0x6c] sm:$0xf] %v1714
      %1971 = vst [vmem:[%s172 + $0x70] sm:$0xf] %v1715
      %1972 = vst [vmem:[%s172 + $0x74] sm:$0xf] %v1716
      %1973 = vst [vmem:[%s172 + $0x78] sm:$0xf] %v1717
      %1974 = vst [vmem:[%s172 + $0x7c] sm:$0xf] %v1718
      %1975 = vst [vmem:[%s172 + $0x80] sm:$0xf] %v1719
      %1976 = vst [vmem:[%s172 + $0x84] sm:$0xf] %v1720
      %1977 = vst [vmem:[%s172 + $0x88] sm:$0xf] %v1721
      %1978 = vst [vmem:[%s172 + $0x8c] sm:$0xf] %v1722
      %1979 = vst [vmem:[%s172 + $0x90] sm:$0xf] %v1723
      %1980 = vst [vmem:[%s172 + $0x94] sm:$0xf] %v1724
      %1981 = vst [vmem:[%s172 + $0x98] sm:$0xf] %v1725
      %1982 = vst [vmem:[%s172 + $0x9c] sm:$0xf] %v1726
      %1983 = vst [vmem:[%s172 + $0xa0] sm:$0xf] %v1727
      %1984 = vst [vmem:[%s172 + $0xa4] sm:$0xf] %v1728
      %1985 = vst [vmem:[%s172 + $0xa8] sm:$0xf] %v1729
      %1986 = vst [vmem:[%s172 + $0xac] sm:$0xf] %v1730
      %1987 = vst [vmem:[%s172 + $0xb0] sm:$0xf] %v1731
      %1988 = vst [vmem:[%s172 + $0xb4] sm:$0xf] %v1732
      %1989 = vst [vmem:[%s172 + $0xb8] sm:$0xf] %v1733
      %1990 = vst [vmem:[%s172 + $0xbc] sm:$0xf] %v1734
      %1991 = vst [vmem:[%s172 + $0xc0] sm:$0xf] %v1735
      %1992 = vst [vmem:[%s172 + $0xc4] sm:$0xf] %v1736
      %1993 = vst [vmem:[%s172 + $0xc8] sm:$0xf] %v1737
      %1994 = vst [vmem:[%s172 + $0xcc] sm:$0xf] %v1738
      %1995 = vst [vmem:[%s172 + $0xd0] sm:$0xf] %v1739
      %1996 = vst [vmem:[%s172 + $0xd4] sm:$0xf] %v1740
      %1997 = vst [vmem:[%s172 + $0xd8] sm:$0xf] %v1741
      %1998 = vst [vmem:[%s172 + $0xdc] sm:$0xf] %v1742
      %1999 = vst [vmem:[%s172 + $0xe0] sm:$0xf] %v1743
      %2000 = vst [vmem:[%s172 + $0xe4] sm:$0xf] %v1744
      %2001 = vst [vmem:[%s172 + $0xe8] sm:$0xf] %v1745
      %2002 = vst [vmem:[%s172 + $0xec] sm:$0xf] %v1746
      %2003 = vst [vmem:[%s172 + $0xf0] sm:$0xf] %v1747
      %2004 = vst [vmem:[%s172 + $0xf4] sm:$0xf] %v1748
      %2005 = vst [vmem:[%s172 + $0xf8] sm:$0xf] %v1749
      %2006 = vst [vmem:[%s172 + $0xfc] sm:$0xf] %v1750
      %2007 = vst [vmem:[%s172 + $0x100] sm:$0xf] %v1751
      %2008 = vst [vmem:[%s172 + $0x104] sm:$0xf] %v1752
      %2009 = vst [vmem:[%s172 + $0x108] sm:$0xf] %v1753
      %2010 = vst [vmem:[%s172 + $0x10c] sm:$0xf] %v1754
      %2011 = vst [vmem:[%s172 + $0x110] sm:$0xf] %v1755
      %2012 = vst [vmem:[%s172 + $0x114] sm:$0xf] %v1756
      %2013 = vst [vmem:[%s172 + $0x118] sm:$0xf] %v1757
      %2014 = vst [vmem:[%s172 + $0x11c] sm:$0xf] %v1758
      %2015 = vst [vmem:[%s172 + $0x120] sm:$0xf] %v1759
      %2016 = vst [vmem:[%s172 + $0x124] sm:$0xf] %v1760
      %2017 = vst [vmem:[%s172 + $0x128] sm:$0xf] %v1761
      %2018 = vst [vmem:[%s172 + $0x12c] sm:$0xf] %v1762
      %2019 = vst [vmem:[%s172 + $0x130] sm:$0xf] %v1763
      %2020 = vst [vmem:[%s172 + $0x134] sm:$0xf] %v1764
      %2021 = vst [vmem:[%s172 + $0x138] sm:$0xf] %v1765
      %2022 = vst [vmem:[%s172 + $0x13c] sm:$0xf] %v1766
      %2023 = vst [vmem:[%s172 + $0x140] sm:$0xf] %v1767
      %2024 = vst [vmem:[%s172 + $0x144] sm:$0xf] %v1768
      %2025 = vst [vmem:[%s172 + $0x148] sm:$0xf] %v1769
      %2026 = vst [vmem:[%s172 + $0x14c] sm:$0xf] %v1770
      %2027 = vst [vmem:[%s172 + $0x150] sm:$0xf] %v1771
      %2028 = vst [vmem:[%s172 + $0x154] sm:$0xf] %v1772
      %2029 = vst [vmem:[%s172 + $0x158] sm:$0xf] %v1773
      %2030 = vst [vmem:[%s172 + $0x15c] sm:$0xf] %v1774
      %2031 = vst [vmem:[%s172 + $0x160] sm:$0xf] %v1775
      %2032 = vst [vmem:[%s172 + $0x164] sm:$0xf] %v1776
      %2033 = vst [vmem:[%s172 + $0x168] sm:$0xf] %v1777
      %2034 = vst [vmem:[%s172 + $0x16c] sm:$0xf] %v1778
      %2035 = vst [vmem:[%s172 + $0x170] sm:$0xf] %v1779
      %2036 = vst [vmem:[%s172 + $0x174] sm:$0xf] %v1780
      %2037 = vst [vmem:[%s172 + $0x178] sm:$0xf] %v1781
      %2038 = vst [vmem:[%s172 + $0x17c] sm:$0xf] %v1782
      %2039 = vst [vmem:[%s172 + $0x180] sm:$0xf] %v1783
      %2040 = vst [vmem:[%s172 + $0x184] sm:$0xf] %v1784
      %2041 = vst [vmem:[%s172 + $0x188] sm:$0xf] %v1785
      %2042 = vst [vmem:[%s172 + $0x18c] sm:$0xf] %v1786
      %2043 = vst [vmem:[%s172 + $0x190] sm:$0xf] %v1787
      %2044 = vst [vmem:[%s172 + $0x194] sm:$0xf] %v1788
      %2045 = vst [vmem:[%s172 + $0x198] sm:$0xf] %v1789
      %2046 = vst [vmem:[%s172 + $0x19c] sm:$0xf] %v1790
      %2047 = vst [vmem:[%s172 + $0x1a0] sm:$0xf] %v1791
      %2048 = vst [vmem:[%s172 + $0x1a4] sm:$0xf] %v1792
      %2049 = vst [vmem:[%s172 + $0x1a8] sm:$0xf] %v1793
      %2050 = vst [vmem:[%s172 + $0x1ac] sm:$0xf] %v1794
      %2051 = vst [vmem:[%s172 + $0x1b0] sm:$0xf] %v1795
      %2052 = vst [vmem:[%s172 + $0x1b4] sm:$0xf] %v1796
      %2053 = vst [vmem:[%s172 + $0x1b8] sm:$0xf] %v1797
      %2054 = vst [vmem:[%s172 + $0x1bc] sm:$0xf] %v1798
      %2055 = vst [vmem:[%s172 + $0x1c0] sm:$0xf] %v1799
      %2056 = vst [vmem:[%s172 + $0x1c4] sm:$0xf] %v1800
      %2057 = vst [vmem:[%s172 + $0x1c8] sm:$0xf] %v1801
      %2058 = vst [vmem:[%s172 + $0x1cc] sm:$0xf] %v1802
      %2059 = vst [vmem:[%s172 + $0x1d0] sm:$0xf] %v1803
      %2060 = vst [vmem:[%s172 + $0x1d4] sm:$0xf] %v1804
      %2061 = vst [vmem:[%s172 + $0x1d8] sm:$0xf] %v1805
      %2062 = vst [vmem:[%s172 + $0x1dc] sm:$0xf] %v1806
      %2063 = vst [vmem:[%s172 + $0x1e0] sm:$0xf] %v1807
      %2064 = vst [vmem:[%s172 + $0x1e4] sm:$0xf] %v1808
      %2065 = vst [vmem:[%s172 + $0x1e8] sm:$0xf] %v1809
      %2066 = vst [vmem:[%s172 + $0x1ec] sm:$0xf] %v1810
      %2067 = vst [vmem:[%s172 + $0x1f0] sm:$0xf] %v1811
      %2068 = vst [vmem:[%s172 + $0x1f4] sm:$0xf] %v1812
      %2069 = vst [vmem:[%s172 + $0x1f8] sm:$0xf] %v1813
      %2070 = vst [vmem:[%s172 + $0x1fc] sm:$0xf] %v1814
      %s2071 = smul.u32 128, %s14
      %p2072 = scmp.lt.s32.totalorder %s2071, 383
      %s2073 = scalar_select %p2072, %s2071, 383
      %s2074 = smul.addr %s2073, 4
      %s2075 = scalar_lea.vmem %s3, %s2074
      // Predicated region
      $region33: #{conv_gemm.1} parent=31 // pred_check
        %p2076 = pneg %p100
      $region34: #{conv_gemm.1} parent=31 // pred_check_branch
        %2078 = sbr.rel (%p2076) target = $region36
      $region35: #{conv_gemm.1} parent=31 // pred_region
        %s2079 = smul.u32 128, %s14
      $region36: #{conv_gemm.1} parent=31 // pred_fallthru
        _
    $region32: #{conv_gemm.1} parent=5 // pred_fallthru
      _
    %p2080 = scmp.le.s32.totalorder 2, %s9
    // Predicated region
    $region37: #{conv_gemm.1} parent=5 // pred_check
      %p2081 = pneg %p2080
    $region38: #{conv_gemm.1} parent=5 // pred_check_branch
      %2083 = sbr.rel (%p2081) target = $region40
    $region39: #{conv_gemm.1} parent=5 // pred_region
      %s2084 = ssub.s32 %s9, 2
      // Predicated region
      $region41: #{conv_gemm.1} parent=39 // pred_check
        %p2085 = pneg %p106
      $region42: #{conv_gemm.1} parent=39 // pred_check_branch
        %2087 = sbr.rel (%p2085) target = $region44
      $region43: #{conv_gemm.1} parent=39 // pred_region
        %s2088 = smul.u32 128, %s15
        %p2089 = scmp.lt.s32.totalorder %s2088, 383
        %s2090 = scalar_select %p2089, %s2088, 383
        %s2091 = smul.addr %s2090, 4
        %s2092 = scalar_lea.vmem %s3, %s2091
      $region44: #{conv_gemm.1} parent=39 // pred_fallthru
        _
    $region40: #{conv_gemm.1} parent=5 // pred_fallthru
      _
  $region6: #{conv_gemm.1} parent=0 // loop_footer
    %s13 = sadd.s32 1, %s9
  $region7: #{conv_gemm.1} parent=0 // loop_footer_branch
    %8 = sbr.rel target = $region3
  $region8: #{conv_gemm.1} parent=0 // loop_exit
    _

</llo_original>
